<compile_context>
chip_gen: v7x
topology: tpu7x:2x2x1
jax: 0.10.0
libtpu: 0.0.40
codegen_flags: <defaults>
</compile_context>

<pallas_src>
import jax
import jax.numpy as jnp
from jax.experimental import pallas as pl
from jax.experimental.pallas import tpu as pltpu

IN_DIM = 12          # source vocabulary size
EMB_DIM = 16
HID_DIM = 32
DROPOUT = 0.5        # eval-mode -> identity

GATE_PAD = 128               # one full lane group per gate (r | z | n)
GP3 = 3 * GATE_PAD           # 384
B_SUBLANE = 8                # f32 sublane tile


def _round_up(x, m):
    return (x + m - 1) // m * m


# --------------------------------------------------------------------------------------
# Kernel: embedding-gather + full GRU recurrence in one single-program pallas_call.
#   src_ref   : (S, B)   int32, SMEM  -- token ids
#   table_ref : (IN_DIM, 1, 3*128) f32, VMEM -- emb @ W_ih + folded biases, per-gate-128
#   whh_ref   : (H, 3*128) bf16, VMEM -- hidden->gate weights, per-gate-128 layout
#   bhn_ref   : (1, H)   f32, VMEM    -- b_hn (stays inside r * (h W_hn + b_hn))
#   h_ref     : (Bp, H)  f32, out     -- final hidden state (padded batch rows = junk)
#   gx_scr    : (S*Bp, 3*128) f32, VMEM scratch -- gathered gate pre-activations
# --------------------------------------------------------------------------------------
def encoder_gru_kernel(src_ref, table_ref, whh_ref, bhn_ref, h_ref, gx_scr):
    S, B = src_ref.shape
    Bp, H = h_ref.shape

    # ---- Input side: pure row gather (embedding + input projection + biases were
    #      folded into `table` at init).  Independent of h -> off the serial chain.
    if B < Bp:
        gx_scr[...] = jnp.zeros_like(gx_scr)          # keep padded batch rows finite
    for t in range(S):
        for b in range(B):
            gx_scr[pl.ds(t * Bp + b, 1), :] = table_ref[src_ref[t, b]]

    whh = whh_ref[...]                                # (H, 3*128) bf16, loop-invariant
    bhn = jnp.broadcast_to(bhn_ref[...], (Bp, H))     # hoisted broadcast (no per-step bcast)

    # ---- t = 0 peeled: h == 0  =>  h @ W_hh == 0 ------------------------------------
    gx = gx_scr[pl.ds(0, Bp), :]                      # (Bp, 3*128)
    r = jax.nn.sigmoid(gx[:, 0:H])
    z = jax.nn.sigmoid(gx[:, GATE_PAD:GATE_PAD + H])
    n = jnp.tanh(gx[:, 2 * GATE_PAD:2 * GATE_PAD + H] + r * bhn)
    h = (1.0 - z) * n

    # ---- remaining steps: short static recurrence, fully unrolled --------------------
    # Per-gate-128 layout => every slice below starts at a vreg boundary (no vrot).
    for t in range(1, S):
        gx = gx_scr[pl.ds(t * Bp, Bp), :]
        gh = jnp.dot(h.astype(jnp.bfloat16), whh,
                     preferred_element_type=jnp.float32)          # (Bp, 3*128)
        r = jax.nn.sigmoid(gx[:, 0:H] + gh[:, 0:H])
        z = jax.nn.sigmoid(gx[:, GATE_PAD:GATE_PAD + H] + gh[:, GATE_PAD:GATE_PAD + H])
        n = jnp.tanh(gx[:, 2 * GATE_PAD:2 * GATE_PAD + H]
                     + r * (gh[:, 2 * GATE_PAD:2 * GATE_PAD + H] + bhn))
        h = (1.0 - z) * n + z * h

    h_ref[...] = h


@jax.jit
def encoder_forward(src, kparams):
    """Matches Encoder.forward: h = GRU(dropout(embedding(src))); returns h of shape (1, B, H)."""
    S, B = src.shape
    Bp = _round_up(max(B, 1), B_SUBLANE)

    smem = pl.BlockSpec(memory_space=pltpu.MemorySpace.SMEM)
    vmem = pl.BlockSpec(memory_space=pltpu.MemorySpace.VMEM)
    h = pl.pallas_call(
        encoder_gru_kernel,
        out_shape=jax.ShapeDtypeStruct((Bp, HID_DIM), jnp.float32),
        in_specs=[smem, vmem, vmem, vmem],
        out_specs=vmem,
        scratch_shapes=[pltpu.VMEM((S * Bp, GP3), jnp.float32)],
    )(src, kparams["table"], kparams["whh"], kparams["bhn"])

    return h[None, :B, :]                                         # (1, B, H) like nn.GRU's h


# --------------------------------------------------------------------------------------
# Parameter construction / re-layout.
# --------------------------------------------------------------------------------------
def _to_per_gate_128(a):
    """(rows, 3H) packed r|z|n -> (rows, 3*128) with each gate at lane 0 of its own group."""
    rows = a.shape[0]
    out = jnp.zeros((rows, GP3), a.dtype)
    for g in range(3):
        out = out.at[:, g * GATE_PAD:g * GATE_PAD + HID_DIM].set(
            a[:, g * HID_DIM:(g + 1) * HID_DIM])
    return out


def init_params(key):
    """Canonical PyTorch-style GRU params (transposed to (in, 3H), gate order r|z|n)."""
    ks = jax.random.split(key, 5)

    def w(k, shape, scale=0.1):
        return jax.random.normal(k, shape, jnp.float32) * scale

    return {
        "emb": w(ks[0], (IN_DIM, EMB_DIM)),
        "wih": w(ks[1], (EMB_DIM, 3 * HID_DIM)),
        "whh": w(ks[2], (HID_DIM, 3 * HID_DIM)),
        "b_ih": w(ks[3], (1, 3 * HID_DIM)),
        "b_hh": w(ks[4], (1, 3 * HID_DIM)),
    }


def prepare_kernel_params(raw):
    """One-time fold: embedding @ W_ih + biases -> lookup table; per-gate-128 layouts."""
    H = HID_DIM
    # b_ir+b_hr and b_iz+b_hz fold into one bias; b_hn stays inside r * (.).
    bi = raw["b_ih"].at[:, :2 * H].add(raw["b_hh"][:, :2 * H])
    # Dropout is identity in eval mode, so the embedding can be folded into W_ih.
    table = raw["emb"] @ raw["wih"] + bi                         # (IN_DIM, 3H)
    return {
        "table": _to_per_gate_128(table)[:, None, :],            # (IN_DIM, 1, 3*128) f32
        "whh": _to_per_gate_128(raw["whh"]).astype(jnp.bfloat16),  # (H, 3*128) bf16
        "bhn": raw["b_hh"][:, 2 * H:],                           # (1, H) f32
    }


# --------------------------------------------------------------------------------------
# Pure-JAX reference (PyTorch nn.GRU semantics) for a correctness check.
# --------------------------------------------------------------------------------------
def encoder_reference(src, raw):
    S, B = src.shape
    H = HID_DIM
    emb = jnp.take(raw["emb"], src, axis=0)                      # (S, B, E)
    wih, whh, b_ih, b_hh = raw["wih"], raw["whh"], raw["b_ih"], raw["b_hh"]
    h = jnp.zeros((B, H), jnp.float32)
    for t in range(S):
        gi = emb[t] @ wih + b_ih
        gh = h @ whh + b_hh
        r = jax.nn.sigmoid(gi[:, :H] + gh[:, :H])
        z = jax.nn.sigmoid(gi[:, H:2 * H] + gh[:, H:2 * H])
        n = jnp.tanh(gi[:, 2 * H:] + r * gh[:, 2 * H:])
        h = (1.0 - z) * n + z * h
    return h[None]


if __name__ == "__main__":
    key = jax.random.PRNGKey(0)
    pkey, skey = jax.random.split(key)

    raw_params = init_params(pkey)
    kernel_params = prepare_kernel_params(raw_params)

    src_len, batch = 8, 2
    src = jax.random.randint(skey, (src_len, batch), 0, IN_DIM, dtype=jnp.int32)

    h = encoder_forward(src, kernel_params)
    h = jax.block_until_ready(h)

    assert h.shape == (1, batch, HID_DIM)
    assert bool(jnp.all(jnp.isfinite(h)))

    h_ref = encoder_reference(src, raw_params)
    assert bool(jnp.allclose(h, h_ref, rtol=1e-3, atol=5e-3)), "mismatch vs JAX reference"

    print("KERNEL_OK")
</pallas_src>

<mosaic_0001>
module attributes {stable_mosaic.version = 11 : i64} {
  func.func @encoder_gru_kernel(%arg0: memref<8x2xi32, #tpu.memory_space<smem>>, %arg1: memref<12x1x384xf32, #tpu.memory_space<vmem>>, %arg2: memref<32x384xbf16, #tpu.memory_space<vmem>>, %arg3: memref<1x32xf32, #tpu.memory_space<vmem>>, %arg4: memref<8x32xf32, #tpu.memory_space<vmem>>, %arg5: memref<64x384xf32, #tpu.memory_space<vmem>>) attributes {dimension_semantics = [], scalar_prefetch = 0 : i64, scratch_operands = 1 : i64, tpu.core_type = #tpu.core_type<tc>} {
    %cst = arith.constant 0.000000e+00 : f32
    %0 = vector.broadcast %cst : f32 to vector<64x384xf32>
    %c0 = arith.constant 0 : index
    %c0_0 = arith.constant 0 : index
    %1 = vector.load %arg5[%c0, %c0_0] : memref<64x384xf32, #tpu.memory_space<vmem>>, vector<64x384xf32>
    tpu.vector_store %arg5[%c0, %c0_0], %0 {strides = array<i32>} : memref<64x384xf32, #tpu.memory_space<vmem>>, vector<64x384xf32>,
    %c0_1 = arith.constant 0 : index
    %c0_2 = arith.constant 0 : index
    %2 = memref.load %arg0[%c0_1, %c0_2] : memref<8x2xi32, #tpu.memory_space<smem>>
    %3 = arith.index_cast %2 : i32 to index
    %c0_3 = arith.constant 0 : index
    %c0_4 = arith.constant 0 : index
    %4 = vector.load %arg1[%3, %c0_3, %c0_4] : memref<12x1x384xf32, #tpu.memory_space<vmem>>, vector<1x1x384xf32>
    %5 = vector.shape_cast %4 : vector<1x1x384xf32> to vector<1x384xf32>
    %c0_5 = arith.constant 0 : index
    %c0_6 = arith.constant 0 : index
    %6 = vector.load %arg5[%c0_5, %c0_6] : memref<64x384xf32, #tpu.memory_space<vmem>>, vector<1x384xf32>
    tpu.vector_store %arg5[%c0_5, %c0_6], %5 {strides = array<i32>} : memref<64x384xf32, #tpu.memory_space<vmem>>, vector<1x384xf32>,
    %c0_7 = arith.constant 0 : index
    %c1 = arith.constant 1 : index
    %7 = memref.load %arg0[%c0_7, %c1] : memref<8x2xi32, #tpu.memory_space<smem>>
    %8 = arith.index_cast %7 : i32 to index
    %c0_8 = arith.constant 0 : index
    %c0_9 = arith.constant 0 : index
    %9 = vector.load %arg1[%8, %c0_8, %c0_9] : memref<12x1x384xf32, #tpu.memory_space<vmem>>, vector<1x1x384xf32>
    %10 = vector.shape_cast %9 : vector<1x1x384xf32> to vector<1x384xf32>
    %c1_10 = arith.constant 1 : index
    %c0_11 = arith.constant 0 : index
    %11 = vector.load %arg5[%c1_10, %c0_11] : memref<64x384xf32, #tpu.memory_space<vmem>>, vector<1x384xf32>
    tpu.vector_store %arg5[%c1_10, %c0_11], %10 {strides = array<i32>} : memref<64x384xf32, #tpu.memory_space<vmem>>, vector<1x384xf32>,
    %c1_12 = arith.constant 1 : index
    %c0_13 = arith.constant 0 : index
    %12 = memref.load %arg0[%c1_12, %c0_13] : memref<8x2xi32, #tpu.memory_space<smem>>
    %13 = arith.index_cast %12 : i32 to index
    %c0_14 = arith.constant 0 : index
    %c0_15 = arith.constant 0 : index
    %14 = vector.load %arg1[%13, %c0_14, %c0_15] : memref<12x1x384xf32, #tpu.memory_space<vmem>>, vector<1x1x384xf32>
    %15 = vector.shape_cast %14 : vector<1x1x384xf32> to vector<1x384xf32>
    %c8 = arith.constant 8 : index
    %c0_16 = arith.constant 0 : index
    %16 = vector.load %arg5[%c8, %c0_16] : memref<64x384xf32, #tpu.memory_space<vmem>>, vector<1x384xf32>
    tpu.vector_store %arg5[%c8, %c0_16], %15 {strides = array<i32>} : memref<64x384xf32, #tpu.memory_space<vmem>>, vector<1x384xf32>,
    %c1_17 = arith.constant 1 : index
    %c1_18 = arith.constant 1 : index
    %17 = memref.load %arg0[%c1_17, %c1_18] : memref<8x2xi32, #tpu.memory_space<smem>>
    %18 = arith.index_cast %17 : i32 to index
    %c0_19 = arith.constant 0 : index
    %c0_20 = arith.constant 0 : index
    %19 = vector.load %arg1[%18, %c0_19, %c0_20] : memref<12x1x384xf32, #tpu.memory_space<vmem>>, vector<1x1x384xf32>
    %20 = vector.shape_cast %19 : vector<1x1x384xf32> to vector<1x384xf32>
    %c9 = arith.constant 9 : index
    %c0_21 = arith.constant 0 : index
    %21 = vector.load %arg5[%c9, %c0_21] : memref<64x384xf32, #tpu.memory_space<vmem>>, vector<1x384xf32>
    tpu.vector_store %arg5[%c9, %c0_21], %20 {strides = array<i32>} : memref<64x384xf32, #tpu.memory_space<vmem>>, vector<1x384xf32>,
    %c2 = arith.constant 2 : index
    %c0_22 = arith.constant 0 : index
    %22 = memref.load %arg0[%c2, %c0_22] : memref<8x2xi32, #tpu.memory_space<smem>>
    %23 = arith.index_cast %22 : i32 to index
    %c0_23 = arith.constant 0 : index
    %c0_24 = arith.constant 0 : index
    %24 = vector.load %arg1[%23, %c0_23, %c0_24] : memref<12x1x384xf32, #tpu.memory_space<vmem>>, vector<1x1x384xf32>
    %25 = vector.shape_cast %24 : vector<1x1x384xf32> to vector<1x384xf32>
    %c16 = arith.constant 16 : index
    %c0_25 = arith.constant 0 : index
    %26 = vector.load %arg5[%c16, %c0_25] : memref<64x384xf32, #tpu.memory_space<vmem>>, vector<1x384xf32>
    tpu.vector_store %arg5[%c16, %c0_25], %25 {strides = array<i32>} : memref<64x384xf32, #tpu.memory_space<vmem>>, vector<1x384xf32>,
    %c2_26 = arith.constant 2 : index
    %c1_27 = arith.constant 1 : index
    %27 = memref.load %arg0[%c2_26, %c1_27] : memref<8x2xi32, #tpu.memory_space<smem>>
    %28 = arith.index_cast %27 : i32 to index
    %c0_28 = arith.constant 0 : index
    %c0_29 = arith.constant 0 : index
    %29 = vector.load %arg1[%28, %c0_28, %c0_29] : memref<12x1x384xf32, #tpu.memory_space<vmem>>, vector<1x1x384xf32>
    %30 = vector.shape_cast %29 : vector<1x1x384xf32> to vector<1x384xf32>
    %c17 = arith.constant 17 : index
    %c0_30 = arith.constant 0 : index
    %31 = vector.load %arg5[%c17, %c0_30] : memref<64x384xf32, #tpu.memory_space<vmem>>, vector<1x384xf32>
    tpu.vector_store %arg5[%c17, %c0_30], %30 {strides = array<i32>} : memref<64x384xf32, #tpu.memory_space<vmem>>, vector<1x384xf32>,
    %c3 = arith.constant 3 : index
    %c0_31 = arith.constant 0 : index
    %32 = memref.load %arg0[%c3, %c0_31] : memref<8x2xi32, #tpu.memory_space<smem>>
    %33 = arith.index_cast %32 : i32 to index
    %c0_32 = arith.constant 0 : index
    %c0_33 = arith.constant 0 : index
    %34 = vector.load %arg1[%33, %c0_32, %c0_33] : memref<12x1x384xf32, #tpu.memory_space<vmem>>, vector<1x1x384xf32>
    %35 = vector.shape_cast %34 : vector<1x1x384xf32> to vector<1x384xf32>
    %c24 = arith.constant 24 : index
    %c0_34 = arith.constant 0 : index
    %36 = vector.load %arg5[%c24, %c0_34] : memref<64x384xf32, #tpu.memory_space<vmem>>, vector<1x384xf32>
    tpu.vector_store %arg5[%c24, %c0_34], %35 {strides = array<i32>} : memref<64x384xf32, #tpu.memory_space<vmem>>, vector<1x384xf32>,
    %c3_35 = arith.constant 3 : index
    %c1_36 = arith.constant 1 : index
    %37 = memref.load %arg0[%c3_35, %c1_36] : memref<8x2xi32, #tpu.memory_space<smem>>
    %38 = arith.index_cast %37 : i32 to index
    %c0_37 = arith.constant 0 : index
    %c0_38 = arith.constant 0 : index
    %39 = vector.load %arg1[%38, %c0_37, %c0_38] : memref<12x1x384xf32, #tpu.memory_space<vmem>>, vector<1x1x384xf32>
    %40 = vector.shape_cast %39 : vector<1x1x384xf32> to vector<1x384xf32>
    %c25 = arith.constant 25 : index
    %c0_39 = arith.constant 0 : index
    %41 = vector.load %arg5[%c25, %c0_39] : memref<64x384xf32, #tpu.memory_space<vmem>>, vector<1x384xf32>
    tpu.vector_store %arg5[%c25, %c0_39], %40 {strides = array<i32>} : memref<64x384xf32, #tpu.memory_space<vmem>>, vector<1x384xf32>,
    %c4 = arith.constant 4 : index
    %c0_40 = arith.constant 0 : index
    %42 = memref.load %arg0[%c4, %c0_40] : memref<8x2xi32, #tpu.memory_space<smem>>
    %43 = arith.index_cast %42 : i32 to index
    %c0_41 = arith.constant 0 : index
    %c0_42 = arith.constant 0 : index
    %44 = vector.load %arg1[%43, %c0_41, %c0_42] : memref<12x1x384xf32, #tpu.memory_space<vmem>>, vector<1x1x384xf32>
    %45 = vector.shape_cast %44 : vector<1x1x384xf32> to vector<1x384xf32>
    %c32 = arith.constant 32 : index
    %c0_43 = arith.constant 0 : index
    %46 = vector.load %arg5[%c32, %c0_43] : memref<64x384xf32, #tpu.memory_space<vmem>>, vector<1x384xf32>
    tpu.vector_store %arg5[%c32, %c0_43], %45 {strides = array<i32>} : memref<64x384xf32, #tpu.memory_space<vmem>>, vector<1x384xf32>,
    %c4_44 = arith.constant 4 : index
    %c1_45 = arith.constant 1 : index
    %47 = memref.load %arg0[%c4_44, %c1_45] : memref<8x2xi32, #tpu.memory_space<smem>>
    %48 = arith.index_cast %47 : i32 to index
    %c0_46 = arith.constant 0 : index
    %c0_47 = arith.constant 0 : index
    %49 = vector.load %arg1[%48, %c0_46, %c0_47] : memref<12x1x384xf32, #tpu.memory_space<vmem>>, vector<1x1x384xf32>
    %50 = vector.shape_cast %49 : vector<1x1x384xf32> to vector<1x384xf32>
    %c33 = arith.constant 33 : index
    %c0_48 = arith.constant 0 : index
    %51 = vector.load %arg5[%c33, %c0_48] : memref<64x384xf32, #tpu.memory_space<vmem>>, vector<1x384xf32>
    tpu.vector_store %arg5[%c33, %c0_48], %50 {strides = array<i32>} : memref<64x384xf32, #tpu.memory_space<vmem>>, vector<1x384xf32>,
    %c5 = arith.constant 5 : index
    %c0_49 = arith.constant 0 : index
    %52 = memref.load %arg0[%c5, %c0_49] : memref<8x2xi32, #tpu.memory_space<smem>>
    %53 = arith.index_cast %52 : i32 to index
    %c0_50 = arith.constant 0 : index
    %c0_51 = arith.constant 0 : index
    %54 = vector.load %arg1[%53, %c0_50, %c0_51] : memref<12x1x384xf32, #tpu.memory_space<vmem>>, vector<1x1x384xf32>
    %55 = vector.shape_cast %54 : vector<1x1x384xf32> to vector<1x384xf32>
    %c40 = arith.constant 40 : index
    %c0_52 = arith.constant 0 : index
    %56 = vector.load %arg5[%c40, %c0_52] : memref<64x384xf32, #tpu.memory_space<vmem>>, vector<1x384xf32>
    tpu.vector_store %arg5[%c40, %c0_52], %55 {strides = array<i32>} : memref<64x384xf32, #tpu.memory_space<vmem>>, vector<1x384xf32>,
    %c5_53 = arith.constant 5 : index
    %c1_54 = arith.constant 1 : index
    %57 = memref.load %arg0[%c5_53, %c1_54] : memref<8x2xi32, #tpu.memory_space<smem>>
    %58 = arith.index_cast %57 : i32 to index
    %c0_55 = arith.constant 0 : index
    %c0_56 = arith.constant 0 : index
    %59 = vector.load %arg1[%58, %c0_55, %c0_56] : memref<12x1x384xf32, #tpu.memory_space<vmem>>, vector<1x1x384xf32>
    %60 = vector.shape_cast %59 : vector<1x1x384xf32> to vector<1x384xf32>
    %c41 = arith.constant 41 : index
    %c0_57 = arith.constant 0 : index
    %61 = vector.load %arg5[%c41, %c0_57] : memref<64x384xf32, #tpu.memory_space<vmem>>, vector<1x384xf32>
    tpu.vector_store %arg5[%c41, %c0_57], %60 {strides = array<i32>} : memref<64x384xf32, #tpu.memory_space<vmem>>, vector<1x384xf32>,
    %c6 = arith.constant 6 : index
    %c0_58 = arith.constant 0 : index
    %62 = memref.load %arg0[%c6, %c0_58] : memref<8x2xi32, #tpu.memory_space<smem>>
    %63 = arith.index_cast %62 : i32 to index
    %c0_59 = arith.constant 0 : index
    %c0_60 = arith.constant 0 : index
    %64 = vector.load %arg1[%63, %c0_59, %c0_60] : memref<12x1x384xf32, #tpu.memory_space<vmem>>, vector<1x1x384xf32>
    %65 = vector.shape_cast %64 : vector<1x1x384xf32> to vector<1x384xf32>
    %c48 = arith.constant 48 : index
    %c0_61 = arith.constant 0 : index
    %66 = vector.load %arg5[%c48, %c0_61] : memref<64x384xf32, #tpu.memory_space<vmem>>, vector<1x384xf32>
    tpu.vector_store %arg5[%c48, %c0_61], %65 {strides = array<i32>} : memref<64x384xf32, #tpu.memory_space<vmem>>, vector<1x384xf32>,
    %c6_62 = arith.constant 6 : index
    %c1_63 = arith.constant 1 : index
    %67 = memref.load %arg0[%c6_62, %c1_63] : memref<8x2xi32, #tpu.memory_space<smem>>
    %68 = arith.index_cast %67 : i32 to index
    %c0_64 = arith.constant 0 : index
    %c0_65 = arith.constant 0 : index
    %69 = vector.load %arg1[%68, %c0_64, %c0_65] : memref<12x1x384xf32, #tpu.memory_space<vmem>>, vector<1x1x384xf32>
    %70 = vector.shape_cast %69 : vector<1x1x384xf32> to vector<1x384xf32>
    %c49 = arith.constant 49 : index
    %c0_66 = arith.constant 0 : index
    %71 = vector.load %arg5[%c49, %c0_66] : memref<64x384xf32, #tpu.memory_space<vmem>>, vector<1x384xf32>
    tpu.vector_store %arg5[%c49, %c0_66], %70 {strides = array<i32>} : memref<64x384xf32, #tpu.memory_space<vmem>>, vector<1x384xf32>,
    %c7 = arith.constant 7 : index
    %c0_67 = arith.constant 0 : index
    %72 = memref.load %arg0[%c7, %c0_67] : memref<8x2xi32, #tpu.memory_space<smem>>
    %73 = arith.index_cast %72 : i32 to index
    %c0_68 = arith.constant 0 : index
    %c0_69 = arith.constant 0 : index
    %74 = vector.load %arg1[%73, %c0_68, %c0_69] : memref<12x1x384xf32, #tpu.memory_space<vmem>>, vector<1x1x384xf32>
    %75 = vector.shape_cast %74 : vector<1x1x384xf32> to vector<1x384xf32>
    %c56 = arith.constant 56 : index
    %c0_70 = arith.constant 0 : index
    %76 = vector.load %arg5[%c56, %c0_70] : memref<64x384xf32, #tpu.memory_space<vmem>>, vector<1x384xf32>
    tpu.vector_store %arg5[%c56, %c0_70], %75 {strides = array<i32>} : memref<64x384xf32, #tpu.memory_space<vmem>>, vector<1x384xf32>,
    %c7_71 = arith.constant 7 : index
    %c1_72 = arith.constant 1 : index
    %77 = memref.load %arg0[%c7_71, %c1_72] : memref<8x2xi32, #tpu.memory_space<smem>>
    %78 = arith.index_cast %77 : i32 to index
    %c0_73 = arith.constant 0 : index
    %c0_74 = arith.constant 0 : index
    %79 = vector.load %arg1[%78, %c0_73, %c0_74] : memref<12x1x384xf32, #tpu.memory_space<vmem>>, vector<1x1x384xf32>
    %80 = vector.shape_cast %79 : vector<1x1x384xf32> to vector<1x384xf32>
    %c57 = arith.constant 57 : index
    %c0_75 = arith.constant 0 : index
    %81 = vector.load %arg5[%c57, %c0_75] : memref<64x384xf32, #tpu.memory_space<vmem>>, vector<1x384xf32>
    tpu.vector_store %arg5[%c57, %c0_75], %80 {strides = array<i32>} : memref<64x384xf32, #tpu.memory_space<vmem>>, vector<1x384xf32>,
    %c0_76 = arith.constant 0 : index
    %c0_77 = arith.constant 0 : index
    %82 = vector.load %arg2[%c0_76, %c0_77] : memref<32x384xbf16, #tpu.memory_space<vmem>>, vector<32x384xbf16>
    %c0_78 = arith.constant 0 : index
    %c0_79 = arith.constant 0 : index
    %83 = vector.load %arg3[%c0_78, %c0_79] : memref<1x32xf32, #tpu.memory_space<vmem>>, vector<1x32xf32>
    %84 = vector.shape_cast %83 : vector<1x32xf32> to vector<1x32xf32>
    %85 = vector.broadcast %84 : vector<1x32xf32> to vector<8x32xf32>
    %c0_80 = arith.constant 0 : index
    %c0_81 = arith.constant 0 : index
    %86 = vector.load %arg5[%c0_80, %c0_81] : memref<64x384xf32, #tpu.memory_space<vmem>>, vector<8x384xf32>
    %87 = vector.extract_strided_slice %86 {offsets = [0, 0], sizes = [8, 32], strides = [1, 1]} : vector<8x384xf32> to vector<8x32xf32>
    %88 = arith.negf %87 : vector<8x32xf32>
    %89 = math.exp %88 : vector<8x32xf32>
    %cst_82 = arith.constant 1.000000e+00 : f32
    %90 = vector.broadcast %cst_82 : f32 to vector<8x32xf32>
    %91 = arith.addf %90, %89 : vector<8x32xf32>
    %92 = arith.divf %90, %91 : vector<8x32xf32>
    %93 = vector.extract_strided_slice %86 {offsets = [0, 128], sizes = [8, 32], strides = [1, 1]} : vector<8x384xf32> to vector<8x32xf32>
    %94 = arith.negf %93 : vector<8x32xf32>
    %95 = math.exp %94 : vector<8x32xf32>
    %cst_83 = arith.constant 1.000000e+00 : f32
    %96 = vector.broadcast %cst_83 : f32 to vector<8x32xf32>
    %97 = arith.addf %96, %95 : vector<8x32xf32>
    %98 = arith.divf %96, %97 : vector<8x32xf32>
    %99 = vector.extract_strided_slice %86 {offsets = [0, 256], sizes = [8, 32], strides = [1, 1]} : vector<8x384xf32> to vector<8x32xf32>
    %100 = arith.mulf %92, %85 : vector<8x32xf32>
    %101 = arith.addf %99, %100 : vector<8x32xf32>
    %102 = math.tanh %101 : vector<8x32xf32>
    %cst_84 = arith.constant 1.000000e+00 : f32
    %103 = vector.broadcast %cst_84 : f32 to vector<8x32xf32>
    %104 = arith.subf %103, %98 : vector<8x32xf32>
    %105 = arith.mulf %104, %102 : vector<8x32xf32>
    %c8_85 = arith.constant 8 : index
    %c0_86 = arith.constant 0 : index
    %106 = vector.load %arg5[%c8_85, %c0_86] : memref<64x384xf32, #tpu.memory_space<vmem>>, vector<8x384xf32>
    %107 = arith.truncf %105 : vector<8x32xf32> to vector<8x32xbf16>
    %cst_87 = arith.constant dense<0.000000e+00> : vector<8x384xf32>
    %108 = tpu.matmul %107, %82, %cst_87 {dimension_numbers = #tpu.dot_dimension_numbers<[1], [0], [0], [1], [0, 0, 1, 1], [], []>} : vector<8x32xbf16>, vector<32x384xbf16>, vector<8x384xf32> -> vector<8x384xf32>
    %109 = vector.extract_strided_slice %106 {offsets = [0, 0], sizes = [8, 32], strides = [1, 1]} : vector<8x384xf32> to vector<8x32xf32>
    %110 = vector.extract_strided_slice %108 {offsets = [0, 0], sizes = [8, 32], strides = [1, 1]} : vector<8x384xf32> to vector<8x32xf32>
    %111 = arith.addf %109, %110 : vector<8x32xf32>
    %112 = arith.negf %111 : vector<8x32xf32>
    %113 = math.exp %112 : vector<8x32xf32>
    %cst_88 = arith.constant 1.000000e+00 : f32
    %114 = vector.broadcast %cst_88 : f32 to vector<8x32xf32>
    %115 = arith.addf %114, %113 : vector<8x32xf32>
    %116 = arith.divf %114, %115 : vector<8x32xf32>
    %117 = vector.extract_strided_slice %106 {offsets = [0, 128], sizes = [8, 32], strides = [1, 1]} : vector<8x384xf32> to vector<8x32xf32>
    %118 = vector.extract_strided_slice %108 {offsets = [0, 128], sizes = [8, 32], strides = [1, 1]} : vector<8x384xf32> to vector<8x32xf32>
    %119 = arith.addf %117, %118 : vector<8x32xf32>
    %120 = arith.negf %119 : vector<8x32xf32>
    %121 = math.exp %120 : vector<8x32xf32>
    %cst_89 = arith.constant 1.000000e+00 : f32
    %122 = vector.broadcast %cst_89 : f32 to vector<8x32xf32>
    %123 = arith.addf %122, %121 : vector<8x32xf32>
    %124 = arith.divf %122, %123 : vector<8x32xf32>
    %125 = vector.extract_strided_slice %106 {offsets = [0, 256], sizes = [8, 32], strides = [1, 1]} : vector<8x384xf32> to vector<8x32xf32>
    %126 = vector.extract_strided_slice %108 {offsets = [0, 256], sizes = [8, 32], strides = [1, 1]} : vector<8x384xf32> to vector<8x32xf32>
    %127 = arith.addf %126, %85 : vector<8x32xf32>
    %128 = arith.mulf %116, %127 : vector<8x32xf32>
    %129 = arith.addf %125, %128 : vector<8x32xf32>
    %130 = math.tanh %129 : vector<8x32xf32>
    %cst_90 = arith.constant 1.000000e+00 : f32
    %131 = vector.broadcast %cst_90 : f32 to vector<8x32xf32>
    %132 = arith.subf %131, %124 : vector<8x32xf32>
    %133 = arith.mulf %132, %130 : vector<8x32xf32>
    %134 = arith.mulf %124, %105 : vector<8x32xf32>
    %135 = arith.addf %133, %134 : vector<8x32xf32>
    %c16_91 = arith.constant 16 : index
    %c0_92 = arith.constant 0 : index
    %136 = vector.load %arg5[%c16_91, %c0_92] : memref<64x384xf32, #tpu.memory_space<vmem>>, vector<8x384xf32>
    %137 = arith.truncf %135 : vector<8x32xf32> to vector<8x32xbf16>
    %cst_93 = arith.constant dense<0.000000e+00> : vector<8x384xf32>
    %138 = tpu.matmul %137, %82, %cst_93 {dimension_numbers = #tpu.dot_dimension_numbers<[1], [0], [0], [1], [0, 0, 1, 1], [], []>} : vector<8x32xbf16>, vector<32x384xbf16>, vector<8x384xf32> -> vector<8x384xf32>
    %139 = vector.extract_strided_slice %136 {offsets = [0, 0], sizes = [8, 32], strides = [1, 1]} : vector<8x384xf32> to vector<8x32xf32>
    %140 = vector.extract_strided_slice %138 {offsets = [0, 0], sizes = [8, 32], strides = [1, 1]} : vector<8x384xf32> to vector<8x32xf32>
    %141 = arith.addf %139, %140 : vector<8x32xf32>
    %142 = arith.negf %141 : vector<8x32xf32>
    %143 = math.exp %142 : vector<8x32xf32>
    %cst_94 = arith.constant 1.000000e+00 : f32
    %144 = vector.broadcast %cst_94 : f32 to vector<8x32xf32>
    %145 = arith.addf %144, %143 : vector<8x32xf32>
    %146 = arith.divf %144, %145 : vector<8x32xf32>
    %147 = vector.extract_strided_slice %136 {offsets = [0, 128], sizes = [8, 32], strides = [1, 1]} : vector<8x384xf32> to vector<8x32xf32>
    %148 = vector.extract_strided_slice %138 {offsets = [0, 128], sizes = [8, 32], strides = [1, 1]} : vector<8x384xf32> to vector<8x32xf32>
    %149 = arith.addf %147, %148 : vector<8x32xf32>
    %150 = arith.negf %149 : vector<8x32xf32>
    %151 = math.exp %150 : vector<8x32xf32>
    %cst_95 = arith.constant 1.000000e+00 : f32
    %152 = vector.broadcast %cst_95 : f32 to vector<8x32xf32>
    %153 = arith.addf %152, %151 : vector<8x32xf32>
    %154 = arith.divf %152, %153 : vector<8x32xf32>
    %155 = vector.extract_strided_slice %136 {offsets = [0, 256], sizes = [8, 32], strides = [1, 1]} : vector<8x384xf32> to vector<8x32xf32>
    %156 = vector.extract_strided_slice %138 {offsets = [0, 256], sizes = [8, 32], strides = [1, 1]} : vector<8x384xf32> to vector<8x32xf32>
    %157 = arith.addf %156, %85 : vector<8x32xf32>
    %158 = arith.mulf %146, %157 : vector<8x32xf32>
    %159 = arith.addf %155, %158 : vector<8x32xf32>
    %160 = math.tanh %159 : vector<8x32xf32>
    %cst_96 = arith.constant 1.000000e+00 : f32
    %161 = vector.broadcast %cst_96 : f32 to vector<8x32xf32>
    %162 = arith.subf %161, %154 : vector<8x32xf32>
    %163 = arith.mulf %162, %160 : vector<8x32xf32>
    %164 = arith.mulf %154, %135 : vector<8x32xf32>
    %165 = arith.addf %163, %164 : vector<8x32xf32>
    %c24_97 = arith.constant 24 : index
    %c0_98 = arith.constant 0 : index
    %166 = vector.load %arg5[%c24_97, %c0_98] : memref<64x384xf32, #tpu.memory_space<vmem>>, vector<8x384xf32>
    %167 = arith.truncf %165 : vector<8x32xf32> to vector<8x32xbf16>
    %cst_99 = arith.constant dense<0.000000e+00> : vector<8x384xf32>
    %168 = tpu.matmul %167, %82, %cst_99 {dimension_numbers = #tpu.dot_dimension_numbers<[1], [0], [0], [1], [0, 0, 1, 1], [], []>} : vector<8x32xbf16>, vector<32x384xbf16>, vector<8x384xf32> -> vector<8x384xf32>
    %169 = vector.extract_strided_slice %166 {offsets = [0, 0], sizes = [8, 32], strides = [1, 1]} : vector<8x384xf32> to vector<8x32xf32>
    %170 = vector.extract_strided_slice %168 {offsets = [0, 0], sizes = [8, 32], strides = [1, 1]} : vector<8x384xf32> to vector<8x32xf32>
    %171 = arith.addf %169, %170 : vector<8x32xf32>
    %172 = arith.negf %171 : vector<8x32xf32>
    %173 = math.exp %172 : vector<8x32xf32>
    %cst_100 = arith.constant 1.000000e+00 : f32
    %174 = vector.broadcast %cst_100 : f32 to vector<8x32xf32>
    %175 = arith.addf %174, %173 : vector<8x32xf32>
    %176 = arith.divf %174, %175 : vector<8x32xf32>
    %177 = vector.extract_strided_slice %166 {offsets = [0, 128], sizes = [8, 32], strides = [1, 1]} : vector<8x384xf32> to vector<8x32xf32>
    %178 = vector.extract_strided_slice %168 {offsets = [0, 128], sizes = [8, 32], strides = [1, 1]} : vector<8x384xf32> to vector<8x32xf32>
    %179 = arith.addf %177, %178 : vector<8x32xf32>
    %180 = arith.negf %179 : vector<8x32xf32>
    %181 = math.exp %180 : vector<8x32xf32>
    %cst_101 = arith.constant 1.000000e+00 : f32
    %182 = vector.broadcast %cst_101 : f32 to vector<8x32xf32>
    %183 = arith.addf %182, %181 : vector<8x32xf32>
    %184 = arith.divf %182, %183 : vector<8x32xf32>
    %185 = vector.extract_strided_slice %166 {offsets = [0, 256], sizes = [8, 32], strides = [1, 1]} : vector<8x384xf32> to vector<8x32xf32>
    %186 = vector.extract_strided_slice %168 {offsets = [0, 256], sizes = [8, 32], strides = [1, 1]} : vector<8x384xf32> to vector<8x32xf32>
    %187 = arith.addf %186, %85 : vector<8x32xf32>
    %188 = arith.mulf %176, %187 : vector<8x32xf32>
    %189 = arith.addf %185, %188 : vector<8x32xf32>
    %190 = math.tanh %189 : vector<8x32xf32>
    %cst_102 = arith.constant 1.000000e+00 : f32
    %191 = vector.broadcast %cst_102 : f32 to vector<8x32xf32>
    %192 = arith.subf %191, %184 : vector<8x32xf32>
    %193 = arith.mulf %192, %190 : vector<8x32xf32>
    %194 = arith.mulf %184, %165 : vector<8x32xf32>
    %195 = arith.addf %193, %194 : vector<8x32xf32>
    %c32_103 = arith.constant 32 : index
    %c0_104 = arith.constant 0 : index
    %196 = vector.load %arg5[%c32_103, %c0_104] : memref<64x384xf32, #tpu.memory_space<vmem>>, vector<8x384xf32>
    %197 = arith.truncf %195 : vector<8x32xf32> to vector<8x32xbf16>
    %cst_105 = arith.constant dense<0.000000e+00> : vector<8x384xf32>
    %198 = tpu.matmul %197, %82, %cst_105 {dimension_numbers = #tpu.dot_dimension_numbers<[1], [0], [0], [1], [0, 0, 1, 1], [], []>} : vector<8x32xbf16>, vector<32x384xbf16>, vector<8x384xf32> -> vector<8x384xf32>
    %199 = vector.extract_strided_slice %196 {offsets = [0, 0], sizes = [8, 32], strides = [1, 1]} : vector<8x384xf32> to vector<8x32xf32>
    %200 = vector.extract_strided_slice %198 {offsets = [0, 0], sizes = [8, 32], strides = [1, 1]} : vector<8x384xf32> to vector<8x32xf32>
    %201 = arith.addf %199, %200 : vector<8x32xf32>
    %202 = arith.negf %201 : vector<8x32xf32>
    %203 = math.exp %202 : vector<8x32xf32>
    %cst_106 = arith.constant 1.000000e+00 : f32
    %204 = vector.broadcast %cst_106 : f32 to vector<8x32xf32>
    %205 = arith.addf %204, %203 : vector<8x32xf32>
    %206 = arith.divf %204, %205 : vector<8x32xf32>
    %207 = vector.extract_strided_slice %196 {offsets = [0, 128], sizes = [8, 32], strides = [1, 1]} : vector<8x384xf32> to vector<8x32xf32>
    %208 = vector.extract_strided_slice %198 {offsets = [0, 128], sizes = [8, 32], strides = [1, 1]} : vector<8x384xf32> to vector<8x32xf32>
    %209 = arith.addf %207, %208 : vector<8x32xf32>
    %210 = arith.negf %209 : vector<8x32xf32>
    %211 = math.exp %210 : vector<8x32xf32>
    %cst_107 = arith.constant 1.000000e+00 : f32
    %212 = vector.broadcast %cst_107 : f32 to vector<8x32xf32>
    %213 = arith.addf %212, %211 : vector<8x32xf32>
    %214 = arith.divf %212, %213 : vector<8x32xf32>
    %215 = vector.extract_strided_slice %196 {offsets = [0, 256], sizes = [8, 32], strides = [1, 1]} : vector<8x384xf32> to vector<8x32xf32>
    %216 = vector.extract_strided_slice %198 {offsets = [0, 256], sizes = [8, 32], strides = [1, 1]} : vector<8x384xf32> to vector<8x32xf32>
    %217 = arith.addf %216, %85 : vector<8x32xf32>
    %218 = arith.mulf %206, %217 : vector<8x32xf32>
    %219 = arith.addf %215, %218 : vector<8x32xf32>
    %220 = math.tanh %219 : vector<8x32xf32>
    %cst_108 = arith.constant 1.000000e+00 : f32
    %221 = vector.broadcast %cst_108 : f32 to vector<8x32xf32>
    %222 = arith.subf %221, %214 : vector<8x32xf32>
    %223 = arith.mulf %222, %220 : vector<8x32xf32>
    %224 = arith.mulf %214, %195 : vector<8x32xf32>
    %225 = arith.addf %223, %224 : vector<8x32xf32>
    %c40_109 = arith.constant 40 : index
    %c0_110 = arith.constant 0 : index
    %226 = vector.load %arg5[%c40_109, %c0_110] : memref<64x384xf32, #tpu.memory_space<vmem>>, vector<8x384xf32>
    %227 = arith.truncf %225 : vector<8x32xf32> to vector<8x32xbf16>
    %cst_111 = arith.constant dense<0.000000e+00> : vector<8x384xf32>
    %228 = tpu.matmul %227, %82, %cst_111 {dimension_numbers = #tpu.dot_dimension_numbers<[1], [0], [0], [1], [0, 0, 1, 1], [], []>} : vector<8x32xbf16>, vector<32x384xbf16>, vector<8x384xf32> -> vector<8x384xf32>
    %229 = vector.extract_strided_slice %226 {offsets = [0, 0], sizes = [8, 32], strides = [1, 1]} : vector<8x384xf32> to vector<8x32xf32>
    %230 = vector.extract_strided_slice %228 {offsets = [0, 0], sizes = [8, 32], strides = [1, 1]} : vector<8x384xf32> to vector<8x32xf32>
    %231 = arith.addf %229, %230 : vector<8x32xf32>
    %232 = arith.negf %231 : vector<8x32xf32>
    %233 = math.exp %232 : vector<8x32xf32>
    %cst_112 = arith.constant 1.000000e+00 : f32
    %234 = vector.broadcast %cst_112 : f32 to vector<8x32xf32>
    %235 = arith.addf %234, %233 : vector<8x32xf32>
    %236 = arith.divf %234, %235 : vector<8x32xf32>
    %237 = vector.extract_strided_slice %226 {offsets = [0, 128], sizes = [8, 32], strides = [1, 1]} : vector<8x384xf32> to vector<8x32xf32>
    %238 = vector.extract_strided_slice %228 {offsets = [0, 128], sizes = [8, 32], strides = [1, 1]} : vector<8x384xf32> to vector<8x32xf32>
    %239 = arith.addf %237, %238 : vector<8x32xf32>
    %240 = arith.negf %239 : vector<8x32xf32>
    %241 = math.exp %240 : vector<8x32xf32>
    %cst_113 = arith.constant 1.000000e+00 : f32
    %242 = vector.broadcast %cst_113 : f32 to vector<8x32xf32>
    %243 = arith.addf %242, %241 : vector<8x32xf32>
    %244 = arith.divf %242, %243 : vector<8x32xf32>
    %245 = vector.extract_strided_slice %226 {offsets = [0, 256], sizes = [8, 32], strides = [1, 1]} : vector<8x384xf32> to vector<8x32xf32>
    %246 = vector.extract_strided_slice %228 {offsets = [0, 256], sizes = [8, 32], strides = [1, 1]} : vector<8x384xf32> to vector<8x32xf32>
    %247 = arith.addf %246, %85 : vector<8x32xf32>
    %248 = arith.mulf %236, %247 : vector<8x32xf32>
    %249 = arith.addf %245, %248 : vector<8x32xf32>
    %250 = math.tanh %249 : vector<8x32xf32>
    %cst_114 = arith.constant 1.000000e+00 : f32
    %251 = vector.broadcast %cst_114 : f32 to vector<8x32xf32>
    %252 = arith.subf %251, %244 : vector<8x32xf32>
    %253 = arith.mulf %252, %250 : vector<8x32xf32>
    %254 = arith.mulf %244, %225 : vector<8x32xf32>
    %255 = arith.addf %253, %254 : vector<8x32xf32>
    %c48_115 = arith.constant 48 : index
    %c0_116 = arith.constant 0 : index
    %256 = vector.load %arg5[%c48_115, %c0_116] : memref<64x384xf32, #tpu.memory_space<vmem>>, vector<8x384xf32>
    %257 = arith.truncf %255 : vector<8x32xf32> to vector<8x32xbf16>
    %cst_117 = arith.constant dense<0.000000e+00> : vector<8x384xf32>
    %258 = tpu.matmul %257, %82, %cst_117 {dimension_numbers = #tpu.dot_dimension_numbers<[1], [0], [0], [1], [0, 0, 1, 1], [], []>} : vector<8x32xbf16>, vector<32x384xbf16>, vector<8x384xf32> -> vector<8x384xf32>
    %259 = vector.extract_strided_slice %256 {offsets = [0, 0], sizes = [8, 32], strides = [1, 1]} : vector<8x384xf32> to vector<8x32xf32>
    %260 = vector.extract_strided_slice %258 {offsets = [0, 0], sizes = [8, 32], strides = [1, 1]} : vector<8x384xf32> to vector<8x32xf32>
    %261 = arith.addf %259, %260 : vector<8x32xf32>
    %262 = arith.negf %261 : vector<8x32xf32>
    %263 = math.exp %262 : vector<8x32xf32>
    %cst_118 = arith.constant 1.000000e+00 : f32
    %264 = vector.broadcast %cst_118 : f32 to vector<8x32xf32>
    %265 = arith.addf %264, %263 : vector<8x32xf32>
    %266 = arith.divf %264, %265 : vector<8x32xf32>
    %267 = vector.extract_strided_slice %256 {offsets = [0, 128], sizes = [8, 32], strides = [1, 1]} : vector<8x384xf32> to vector<8x32xf32>
    %268 = vector.extract_strided_slice %258 {offsets = [0, 128], sizes = [8, 32], strides = [1, 1]} : vector<8x384xf32> to vector<8x32xf32>
    %269 = arith.addf %267, %268 : vector<8x32xf32>
    %270 = arith.negf %269 : vector<8x32xf32>
    %271 = math.exp %270 : vector<8x32xf32>
    %cst_119 = arith.constant 1.000000e+00 : f32
    %272 = vector.broadcast %cst_119 : f32 to vector<8x32xf32>
    %273 = arith.addf %272, %271 : vector<8x32xf32>
    %274 = arith.divf %272, %273 : vector<8x32xf32>
    %275 = vector.extract_strided_slice %256 {offsets = [0, 256], sizes = [8, 32], strides = [1, 1]} : vector<8x384xf32> to vector<8x32xf32>
    %276 = vector.extract_strided_slice %258 {offsets = [0, 256], sizes = [8, 32], strides = [1, 1]} : vector<8x384xf32> to vector<8x32xf32>
    %277 = arith.addf %276, %85 : vector<8x32xf32>
    %278 = arith.mulf %266, %277 : vector<8x32xf32>
    %279 = arith.addf %275, %278 : vector<8x32xf32>
    %280 = math.tanh %279 : vector<8x32xf32>
    %cst_120 = arith.constant 1.000000e+00 : f32
    %281 = vector.broadcast %cst_120 : f32 to vector<8x32xf32>
    %282 = arith.subf %281, %274 : vector<8x32xf32>
    %283 = arith.mulf %282, %280 : vector<8x32xf32>
    %284 = arith.mulf %274, %255 : vector<8x32xf32>
    %285 = arith.addf %283, %284 : vector<8x32xf32>
    %c56_121 = arith.constant 56 : index
    %c0_122 = arith.constant 0 : index
    %286 = vector.load %arg5[%c56_121, %c0_122] : memref<64x384xf32, #tpu.memory_space<vmem>>, vector<8x384xf32>
    %287 = arith.truncf %285 : vector<8x32xf32> to vector<8x32xbf16>
    %cst_123 = arith.constant dense<0.000000e+00> : vector<8x384xf32>
    %288 = tpu.matmul %287, %82, %cst_123 {dimension_numbers = #tpu.dot_dimension_numbers<[1], [0], [0], [1], [0, 0, 1, 1], [], []>} : vector<8x32xbf16>, vector<32x384xbf16>, vector<8x384xf32> -> vector<8x384xf32>
    %289 = vector.extract_strided_slice %286 {offsets = [0, 0], sizes = [8, 32], strides = [1, 1]} : vector<8x384xf32> to vector<8x32xf32>
    %290 = vector.extract_strided_slice %288 {offsets = [0, 0], sizes = [8, 32], strides = [1, 1]} : vector<8x384xf32> to vector<8x32xf32>
    %291 = arith.addf %289, %290 : vector<8x32xf32>
    %292 = arith.negf %291 : vector<8x32xf32>
    %293 = math.exp %292 : vector<8x32xf32>
    %cst_124 = arith.constant 1.000000e+00 : f32
    %294 = vector.broadcast %cst_124 : f32 to vector<8x32xf32>
    %295 = arith.addf %294, %293 : vector<8x32xf32>
    %296 = arith.divf %294, %295 : vector<8x32xf32>
    %297 = vector.extract_strided_slice %286 {offsets = [0, 128], sizes = [8, 32], strides = [1, 1]} : vector<8x384xf32> to vector<8x32xf32>
    %298 = vector.extract_strided_slice %288 {offsets = [0, 128], sizes = [8, 32], strides = [1, 1]} : vector<8x384xf32> to vector<8x32xf32>
    %299 = arith.addf %297, %298 : vector<8x32xf32>
    %300 = arith.negf %299 : vector<8x32xf32>
    %301 = math.exp %300 : vector<8x32xf32>
    %cst_125 = arith.constant 1.000000e+00 : f32
    %302 = vector.broadcast %cst_125 : f32 to vector<8x32xf32>
    %303 = arith.addf %302, %301 : vector<8x32xf32>
    %304 = arith.divf %302, %303 : vector<8x32xf32>
    %305 = vector.extract_strided_slice %286 {offsets = [0, 256], sizes = [8, 32], strides = [1, 1]} : vector<8x384xf32> to vector<8x32xf32>
    %306 = vector.extract_strided_slice %288 {offsets = [0, 256], sizes = [8, 32], strides = [1, 1]} : vector<8x384xf32> to vector<8x32xf32>
    %307 = arith.addf %306, %85 : vector<8x32xf32>
    %308 = arith.mulf %296, %307 : vector<8x32xf32>
    %309 = arith.addf %305, %308 : vector<8x32xf32>
    %310 = math.tanh %309 : vector<8x32xf32>
    %cst_126 = arith.constant 1.000000e+00 : f32
    %311 = vector.broadcast %cst_126 : f32 to vector<8x32xf32>
    %312 = arith.subf %311, %304 : vector<8x32xf32>
    %313 = arith.mulf %312, %310 : vector<8x32xf32>
    %314 = arith.mulf %304, %285 : vector<8x32xf32>
    %315 = arith.addf %313, %314 : vector<8x32xf32>
    %c0_127 = arith.constant 0 : index
    %c0_128 = arith.constant 0 : index
    %316 = vector.load %arg4[%c0_127, %c0_128] : memref<8x32xf32, #tpu.memory_space<vmem>>, vector<8x32xf32>
    tpu.vector_store %arg4[%c0_127, %c0_128], %315 {strides = array<i32>} : memref<8x32xf32, #tpu.memory_space<vmem>>, vector<8x32xf32>,
    return
  }
}

</mosaic_0001>

<llo_original>
// kernel: encoder_forward.1
$region0: #{encoder_forward.1}
  #allocation0 [shape = 'u32[]', space=smem, size = 0x4, offset = 0x4, fixed_abs, tag = 'smem constant byte address 0x4 - core index']
  #allocation1 [shape = 'u32[144,128]{1,0:T(1,128)}', space=vmem, size = 0x12000, scoped, tag = 'internal scratch']
  #allocation2 [shape = 'f32[64,384]{1,0:T(8,128)}', space=vmem, size = 0x18000, scoped, tag = 'scratch operand']
  %s0 = inlined_call_operand.vmem [shape: s32[8,2], index: 0, kind: input, shape index: {}]
  %s1 = inlined_call_operand.hbm [shape: f32[12,1,384], index: 1, kind: input, shape index: {}]
  %s2 = inlined_call_operand.hbm [shape: bf16[32,384], index: 2, kind: input, shape index: {}]
  %s3 = inlined_call_operand.vmem [shape: f32[1,32], index: 3, kind: input, shape index: {}]
  %s4 = inlined_call_operand.vmem [shape: f32[8,32], index: 4, kind: output, shape index: {}]
  %s5 = sld [smem:[#allocation0]]
  $region38: #{encoder_forward.1} parent=0
    _
  %s7 = ssub.s32 1, %s5
  %s8 = scalar_select 0, %s7, %s5
  $region1: #{encoder_forward.1} parent=0
    #allocation3 [shape = 'u8[4096]{0}', space=smem, size = 0x1000, scoped, tag = 'input window, operand 0, single buffered']
    #allocation4 [shape = 's32[1]{0}', space=sflag, size = 0x4, scoped, tag = 'scoped memory for encoder_forward.1']
    #allocation5 [shape = 's32[1]{0}', space=sflag, size = 0x4, scoped, tag = 'scoped memory for encoder_forward.1']
    #allocation6 [shape = 'u8[18432]{0}', space=vmem, size = 0x4800, scoped, tag = 'input window, operand 1, single buffered']
    #allocation7 [shape = 'u8[24576]{0}', space=vmem, size = 0x6000, scoped, tag = 'input window, operand 2, single buffered']
    #allocation8 [shape = 's32[1]{0}', space=sflag, size = 0x4, scoped, tag = 'scoped memory for encoder_forward.1']
    %9 = vsyncpa [#allocation5], 0
    %10 = vsyncpa [#allocation4], 0
    %11 = vsyncpa [#allocation8], 0
    // Predicated region
    $region2: #{encoder_forward.1} parent=1 // pred_check
      _
    $region3: #{encoder_forward.1} parent=1 // pred_check_branch
      %13 = sbr.rel (0) target = $region5
    $region4: #{encoder_forward.1} parent=1 // pred_region
      %s15 = ssub.s32 128, 128
      %16 = vsyncadd [#allocation5], %s15
      %s18 = sshll.u32 %s0, 4
      %s19 = int_to_ptr.vmem [resolvable:$true] %s18
      %21 = dma.vmem_to_smem %s19, 128, [#allocation3], [#allocation5]
    $region5: #{encoder_forward.1} parent=1 // pred_fallthru
      _
    // Predicated region
    $region6: #{encoder_forward.1} parent=1 // pred_check
      _
    $region7: #{encoder_forward.1} parent=1 // pred_check_branch
      %23 = sbr.rel (0) target = $region9
    $region8: #{encoder_forward.1} parent=1 // pred_region
      %s25 = ssub.s32 576, 576
      %26 = vsyncadd [#allocation4], %s25
      %s27 = sshll.u32 [#allocation6], 4
      %s28 = int_to_ptr.vmem [resolvable:$true] %s27
      %33 = dma.hbm_to_vmem [thread:$0]  %s1, 576, %s28, [#allocation4], 48, 48, 3
    $region9: #{encoder_forward.1} parent=1 // pred_fallthru
      _
    // Predicated region
    $region10: #{encoder_forward.1} parent=1 // pred_check
      _
    $region11: #{encoder_forward.1} parent=1 // pred_check_branch
      %35 = sbr.rel (0) target = $region13
    $region12: #{encoder_forward.1} parent=1 // pred_region
      %s37 = ssub.s32 768, 768
      %38 = vsyncadd [#allocation8], %s37
      %s39 = sshll.u32 [#allocation7], 4
      %s40 = int_to_ptr.vmem [resolvable:$true] %s39
      %45 = dma.hbm_to_vmem [thread:$0]  %s2, 768, %s40, [#allocation8], 192, 192, 12
    $region13: #{encoder_forward.1} parent=1 // pred_fallthru
      _
    // Predicated region
    $region14: #{encoder_forward.1} parent=1 // pred_check
      _
    $region15: #{encoder_forward.1} parent=1 // pred_check_branch
      %47 = sbr.rel (0) target = $region17
    $region16: #{encoder_forward.1} parent=1 // pred_region
      _
    $region17: #{encoder_forward.1} parent=1 // pred_fallthru
      _
    // Predicated region
    $region18: #{encoder_forward.1} parent=1 // pred_check
      _
    $region19: #{encoder_forward.1} parent=1 // pred_check_branch
      %49 = sbr.rel (0) target = $region21
    $region20: #{encoder_forward.1} parent=1 // pred_region
      %50 = dma.done [#allocation5], 128
    $region21: #{encoder_forward.1} parent=1 // pred_fallthru
      _
    // Predicated region
    $region22: #{encoder_forward.1} parent=1 // pred_check
      _
    $region23: #{encoder_forward.1} parent=1 // pred_check_branch
      %52 = sbr.rel (0) target = $region25
    $region24: #{encoder_forward.1} parent=1 // pred_region
      %53 = dma.done [#allocation4], 576
    $region25: #{encoder_forward.1} parent=1 // pred_fallthru
      _
    // Predicated region
    $region26: #{encoder_forward.1} parent=1 // pred_check
      _
    $region27: #{encoder_forward.1} parent=1 // pred_check_branch
      %55 = sbr.rel (0) target = $region29
    $region28: #{encoder_forward.1} parent=1 // pred_region
      %56 = dma.done [#allocation8], 768
    $region29: #{encoder_forward.1} parent=1 // pred_fallthru
      _
    %57 = sfence
    %59 = vst [vmem:[#allocation2] sm:$0xff] 0.0
    %60 = vst [vmem:[#allocation2 + $0x8] sm:$0xff] 0.0
    %61 = vst [vmem:[#allocation2 + $0x10] sm:$0xff] 0.0
    %62 = vst [vmem:[#allocation2 + $0x18] sm:$0xff] 0.0
    %63 = vst [vmem:[#allocation2 + $0x20] sm:$0xff] 0.0
    %64 = vst [vmem:[#allocation2 + $0x28] sm:$0xff] 0.0
    %65 = vst [vmem:[#allocation2 + $0x30] sm:$0xff] 0.0
    %66 = vst [vmem:[#allocation2 + $0x38] sm:$0xff] 0.0
    %67 = vst [vmem:[#allocation2 + $0x40] sm:$0xff] 0.0
    %68 = vst [vmem:[#allocation2 + $0x48] sm:$0xff] 0.0
    %69 = vst [vmem:[#allocation2 + $0x50] sm:$0xff] 0.0
    %70 = vst [vmem:[#allocation2 + $0x58] sm:$0xff] 0.0
    %71 = vst [vmem:[#allocation2 + $0x60] sm:$0xff] 0.0
    %72 = vst [vmem:[#allocation2 + $0x68] sm:$0xff] 0.0
    %73 = vst [vmem:[#allocation2 + $0x70] sm:$0xff] 0.0
    %74 = vst [vmem:[#allocation2 + $0x78] sm:$0xff] 0.0
    %75 = vst [vmem:[#allocation2 + $0x80] sm:$0xff] 0.0
    %76 = vst [vmem:[#allocation2 + $0x88] sm:$0xff] 0.0
    %77 = vst [vmem:[#allocation2 + $0x90] sm:$0xff] 0.0
    %78 = vst [vmem:[#allocation2 + $0x98] sm:$0xff] 0.0
    %79 = vst [vmem:[#allocation2 + $0xa0] sm:$0xff] 0.0
    %80 = vst [vmem:[#allocation2 + $0xa8] sm:$0xff] 0.0
    %81 = vst [vmem:[#allocation2 + $0xb0] sm:$0xff] 0.0
    %82 = vst [vmem:[#allocation2 + $0xb8] sm:$0xff] 0.0
    %s83 = sld [smem:[#allocation3]]
    %s84 = smul.u32 %s83, 3
    %s85 = scalar_lea.vmem [#allocation6], %s84
    %v86 = vld [vmem:[%s85] sm:$0x7]
    %v87 = vlaneseq
    %vm88 = vcmp.ge.s32.totalorder %v87, 0
    %vm89 = vcmp.lt.s32.totalorder %v87, 384
    %vm90 = vmand %vm88, %vm89
    %91 = vst.msk [vmem:[#allocation2] ss:$8 sm:$0x7] %vm90, %v86
    %92 = vst.msk [vmem:[#allocation2] ss:$8 sm:$0x0] %vm90, %v86
    %s93 = sld [smem:[#allocation3 + $0x1]]
    %s94 = smul.u32 %s93, 3
    %s95 = scalar_lea.vmem [#allocation6], %s94
    %v96 = vld [vmem:[%s95] sm:$0x7]
    %s97 = scalar_lea.vmem [#allocation2], 1
    %98 = vst.msk [vmem:[%s97] ss:$8 sm:$0x7] %vm90, %v96
    %99 = vst.msk [vmem:[%s97] ss:$8 sm:$0x0] %vm90, %v96
    %s100 = sld [smem:[#allocation3 + $0x80]]
    %s101 = smul.u32 %s100, 3
    %s102 = scalar_lea.vmem [#allocation6], %s101
    %v103 = vld [vmem:[%s102] sm:$0x7]
    %s104 = scalar_lea.vmem [#allocation2], 24
    %105 = vst.msk [vmem:[%s104] ss:$8 sm:$0x7] %vm90, %v103
    %106 = vst.msk [vmem:[%s104] ss:$8 sm:$0x0] %vm90, %v103
    %s107 = sld [smem:[#allocation3 + $0x81]]
    %s108 = smul.u32 %s107, 3
    %s109 = scalar_lea.vmem [#allocation6], %s108
    %v110 = vld [vmem:[%s109] sm:$0x7]
    %s111 = scalar_lea.vmem [#allocation2], 25
    %112 = vst.msk [vmem:[%s111] ss:$8 sm:$0x7] %vm90, %v110
    %113 = vst.msk [vmem:[%s111] ss:$8 sm:$0x0] %vm90, %v110
    %s114 = sld [smem:[#allocation3 + $0x100]]
    %s115 = smul.u32 %s114, 3
    %s116 = scalar_lea.vmem [#allocation6], %s115
    %v117 = vld [vmem:[%s116] sm:$0x7]
    %s118 = scalar_lea.vmem [#allocation2], 48
    %119 = vst.msk [vmem:[%s118] ss:$8 sm:$0x7] %vm90, %v117
    %120 = vst.msk [vmem:[%s118] ss:$8 sm:$0x0] %vm90, %v117
    %s121 = sld [smem:[#allocation3 + $0x101]]
    %s122 = smul.u32 %s121, 3
    %s123 = scalar_lea.vmem [#allocation6], %s122
    %v124 = vld [vmem:[%s123] sm:$0x7]
    %s125 = scalar_lea.vmem [#allocation2], 49
    %126 = vst.msk [vmem:[%s125] ss:$8 sm:$0x7] %vm90, %v124
    %127 = vst.msk [vmem:[%s125] ss:$8 sm:$0x0] %vm90, %v124
    %s128 = sld [smem:[#allocation3 + $0x180]]
    %s129 = smul.u32 %s128, 3
    %s130 = scalar_lea.vmem [#allocation6], %s129
    %v131 = vld [vmem:[%s130] sm:$0x7]
    %s132 = scalar_lea.vmem [#allocation2], 72
    %133 = vst.msk [vmem:[%s132] ss:$8 sm:$0x7] %vm90, %v131
    %134 = vst.msk [vmem:[%s132] ss:$8 sm:$0x0] %vm90, %v131
    %s135 = sld [smem:[#allocation3 + $0x181]]
    %s136 = smul.u32 %s135, 3
    %s137 = scalar_lea.vmem [#allocation6], %s136
    %v138 = vld [vmem:[%s137] sm:$0x7]
    %s139 = scalar_lea.vmem [#allocation2], 73
    %140 = vst.msk [vmem:[%s139] ss:$8 sm:$0x7] %vm90, %v138
    %141 = vst.msk [vmem:[%s139] ss:$8 sm:$0x0] %vm90, %v138
    %s142 = sld [smem:[#allocation3 + $0x200]]
    %s143 = smul.u32 %s142, 3
    %s144 = scalar_lea.vmem [#allocation6], %s143
    %v145 = vld [vmem:[%s144] sm:$0x7]
    %s146 = scalar_lea.vmem [#allocation2], 96
    %147 = vst.msk [vmem:[%s146] ss:$8 sm:$0x7] %vm90, %v145
    %148 = vst.msk [vmem:[%s146] ss:$8 sm:$0x0] %vm90, %v145
    %s149 = sld [smem:[#allocation3 + $0x201]]
    %s150 = smul.u32 %s149, 3
    %s151 = scalar_lea.vmem [#allocation6], %s150
    %v152 = vld [vmem:[%s151] sm:$0x7]
    %s153 = scalar_lea.vmem [#allocation2], 97
    %154 = vst.msk [vmem:[%s153] ss:$8 sm:$0x7] %vm90, %v152
    %155 = vst.msk [vmem:[%s153] ss:$8 sm:$0x0] %vm90, %v152
    %s156 = sld [smem:[#allocation3 + $0x280]]
    %s157 = smul.u32 %s156, 3
    %s158 = scalar_lea.vmem [#allocation6], %s157
    %v159 = vld [vmem:[%s158] sm:$0x7]
    %s160 = scalar_lea.vmem [#allocation2], 120
    %161 = vst.msk [vmem:[%s160] ss:$8 sm:$0x7] %vm90, %v159
    %162 = vst.msk [vmem:[%s160] ss:$8 sm:$0x0] %vm90, %v159
    %s163 = sld [smem:[#allocation3 + $0x281]]
    %s164 = smul.u32 %s163, 3
    %s165 = scalar_lea.vmem [#allocation6], %s164
    %v166 = vld [vmem:[%s165] sm:$0x7]
    %s167 = scalar_lea.vmem [#allocation2], 121
    %168 = vst.msk [vmem:[%s167] ss:$8 sm:$0x7] %vm90, %v166
    %169 = vst.msk [vmem:[%s167] ss:$8 sm:$0x0] %vm90, %v166
    %s170 = sld [smem:[#allocation3 + $0x300]]
    %s171 = smul.u32 %s170, 3
    %s172 = scalar_lea.vmem [#allocation6], %s171
    %v173 = vld [vmem:[%s172] sm:$0x7]
    %s174 = scalar_lea.vmem [#allocation2], 144
    %175 = vst.msk [vmem:[%s174] ss:$8 sm:$0x7] %vm90, %v173
    %176 = vst.msk [vmem:[%s174] ss:$8 sm:$0x0] %vm90, %v173
    %s177 = sld [smem:[#allocation3 + $0x301]]
    %s178 = smul.u32 %s177, 3
    %s179 = scalar_lea.vmem [#allocation6], %s178
    %v180 = vld [vmem:[%s179] sm:$0x7]
    %s181 = scalar_lea.vmem [#allocation2], 145
    %182 = vst.msk [vmem:[%s181] ss:$8 sm:$0x7] %vm90, %v180
    %183 = vst.msk [vmem:[%s181] ss:$8 sm:$0x0] %vm90, %v180
    %s184 = sld [smem:[#allocation3 + $0x380]]
    %s185 = smul.u32 %s184, 3
    %s186 = scalar_lea.vmem [#allocation6], %s185
    %v187 = vld [vmem:[%s186] sm:$0x7]
    %s188 = scalar_lea.vmem [#allocation2], 168
    %189 = vst.msk [vmem:[%s188] ss:$8 sm:$0x7] %vm90, %v187
    %190 = vst.msk [vmem:[%s188] ss:$8 sm:$0x0] %vm90, %v187
    %s191 = sld [smem:[#allocation3 + $0x381]]
    %s192 = smul.u32 %s191, 3
    %s193 = scalar_lea.vmem [#allocation6], %s192
    %v194 = vld [vmem:[%s193] sm:$0x7]
    %s195 = scalar_lea.vmem [#allocation2], 169
    %196 = vst.msk [vmem:[%s195] ss:$8 sm:$0x7] %vm90, %v194
    %197 = vst.msk [vmem:[%s195] ss:$8 sm:$0x0] %vm90, %v194
    %v198 = vld [vmem:[#allocation7] sm:$0xff]
    %v199 = vld [vmem:[#allocation7 + $0x8] sm:$0xf]
    %v200 = vld [vmem:[#allocation7 + $0xc] sm:$0xff]
    %v201 = vld [vmem:[#allocation7 + $0x14] sm:$0xf]
    %v202 = vld [vmem:[#allocation7 + $0x18] sm:$0xff]
    %v203 = vld [vmem:[#allocation7 + $0x20] sm:$0xf]
    %v204 = vld [vmem:[#allocation7 + $0x24] sm:$0xff]
    %v205 = vld [vmem:[#allocation7 + $0x2c] sm:$0xf]
    %v206 = vld [vmem:[%s3] sm:$0x1]
    %v208 = vlaneseq
    %v209 = vshrl.u32 %v208, 7
    %v210 = vsub.s32 0, %v209
    %v211 = vrot.slane %v206, %v210
    %v213 = vld [vmem:[#allocation2] sm:$0xff]
    %v214 = vld [vmem:[#allocation2 + $0x8] sm:$0xff]
    %v215 = vld [vmem:[#allocation2 + $0x10] sm:$0xff]
    %v216 = vxor.u32 %v213, 2147483648
    %v217 = vmul.f32 %v216, 1.442695
    %v218 = vpow.pop %v217
    %v219 = vadd.f32 %v218, 1.0
    %v220 = vrcp.pop %v219
    %v221 = vmul.f32 1.0, %v220
    %v222 = vxor.u32 %v214, 2147483648
    %v223 = vmul.f32 %v222, 1.442695
    %v224 = vpow.pop %v223
    %v225 = vadd.f32 %v224, 1.0
    %v226 = vrcp.pop %v225
    %v227 = vmul.f32 1.0, %v226
    %v228 = vmul.f32 %v221, %v211
    %v229 = vadd.f32 %v215, %v228
    %v230 = vtanh.pop %v229
    %v231 = vsub.f32 1.0, %v227
    %v232 = vmul.f32 %v231, %v230
    %v233 = vld [vmem:[#allocation2 + $0x18] sm:$0xff]
    %v234 = vld [vmem:[#allocation2 + $0x20] sm:$0xff]
    %v235 = vld [vmem:[#allocation2 + $0x28] sm:$0xff]
    %v236 = vpack.c.bf16 %v232, %v232
    %v245 = vunpack.c.l.b16 %v198
    %v246 = vunpack.c.h.b16 %v198
    %v247 = vunpack.c.l.b16 %v199
    %v248 = vunpack.c.l.b16 %v200
    %v249 = vunpack.c.h.b16 %v200
    %v250 = vunpack.c.l.b16 %v201
    %v251 = vunpack.c.l.b16 %v202
    %v252 = vunpack.c.h.b16 %v202
    %v253 = vunpack.c.l.b16 %v203
    %v254 = vunpack.c.l.b16 %v204
    %v255 = vunpack.c.h.b16 %v204
    %v256 = vunpack.c.l.b16 %v205
    %v257 = vpack.c.b16 %v248, %v245
    %v258 = vpack.c.b16 %v249, %v246
    %v259 = vpack.c.b16 %v250, %v247
    %v260 = vpack.c.b16 %v254, %v251
    %v261 = vpack.c.b16 %v255, %v252
    %v262 = vpack.c.b16 %v256, %v253
    %vm269 = vcmask 261120
    %v271 = vsel %vm269, %v236, 0
    %273 = vmatprep.subr.bf16.mxu0 %v258
    %274 = vmatpush1.bf16.msra.mxu0 %v257
    %275 = vmatprep.subr.bf16.mxu0 %v261
    %276 = vmatpush1.bf16.msra.mxu0 %v260
    %277 = vmatprep.subr.bf16.mxu0 0
    %278 = vmatpush1.bf16.msra.mxu0 0
    %279 = vmatprep.subr.bf16.mxu0 0
    %280 = vmatpush1.bf16.msra.mxu0 0
    %281 = vmatprep.subr.bf16.mxu0 0
    %282 = vmatpush1.bf16.msra.mxu0 0
    %283 = vmatprep.subr.bf16.mxu0 0
    %284 = vmatpush1.bf16.msra.mxu0 0
    %285 = vmatprep.subr.bf16.mxu0 0
    %286 = vmatpush1.bf16.msra.mxu0 0
    %287 = vmatprep.subr.bf16.mxu0 0
    %288 = vmatpush1.bf16.msra.mxu0 0
    %289 = vmatprep.subr.bf16.mxu0 0
    %290 = vmatpush1.bf16.msra.mxu0 0
    %291 = vmatprep.subr.bf16.mxu0 0
    %292 = vmatpush1.bf16.msra.mxu0 0
    %293 = vmatprep.subr.bf16.mxu0 0
    %294 = vmatpush1.bf16.msra.mxu0 0
    %295 = vmatprep.subr.bf16.mxu0 0
    %296 = vmatpush1.bf16.msra.mxu0 0
    %297 = vmatprep.subr.bf16.mxu0 0
    %298 = vmatpush1.bf16.msra.mxu0 0
    %299 = vmatprep.subr.bf16.mxu0 0
    %300 = vmatpush1.bf16.msra.mxu0 0
    %301 = vmatprep.subr.bf16.mxu0 0
    %302 = vmatpush1.bf16.msra.mxu0 0
    %303 = vmatprep.subr.bf16.mxu0 0
    %304 = vmatpush1.bf16.msra.mxu0 0
    %305 = vmatprep.mubr.bf16.mxu0 0
    %306 = vmatmul.mubr.bf16.gmra.mrb[0].mxu0 %v271
    %v307 = vpop.f32.mrb[0].mxu0
    %v308 = vadd.f32 0.0, %v307
    %v309 = vpop.f32.mrb[0].mxu0
    %v310 = vadd.f32 0.0, %v309
    %v311 = vpop.f32.mrb[0].mxu0
    %v312 = vpop.f32.mrb[0].mxu0
    %313 = vdwg.mxu0
    %314 = vmatprep.subr.bf16.mxu0 0
    %315 = vmatpush1.bf16.msra.mxu0 %v259
    %316 = vmatprep.subr.bf16.mxu0 0
    %317 = vmatpush1.bf16.msra.mxu0 %v262
    %318 = vmatprep.subr.bf16.mxu0 0
    %319 = vmatpush1.bf16.msra.mxu0 0
    %320 = vmatprep.subr.bf16.mxu0 0
    %321 = vmatpush1.bf16.msra.mxu0 0
    %322 = vmatprep.subr.bf16.mxu0 0
    %323 = vmatpush1.bf16.msra.mxu0 0
    %324 = vmatprep.subr.bf16.mxu0 0
    %325 = vmatpush1.bf16.msra.mxu0 0
    %326 = vmatprep.subr.bf16.mxu0 0
    %327 = vmatpush1.bf16.msra.mxu0 0
    %328 = vmatprep.subr.bf16.mxu0 0
    %329 = vmatpush1.bf16.msra.mxu0 0
    %330 = vmatprep.subr.bf16.mxu0 0
    %331 = vmatpush1.bf16.msra.mxu0 0
    %332 = vmatprep.subr.bf16.mxu0 0
    %333 = vmatpush1.bf16.msra.mxu0 0
    %334 = vmatprep.subr.bf16.mxu0 0
    %335 = vmatpush1.bf16.msra.mxu0 0
    %336 = vmatprep.subr.bf16.mxu0 0
    %337 = vmatpush1.bf16.msra.mxu0 0
    %338 = vmatprep.subr.bf16.mxu0 0
    %339 = vmatpush1.bf16.msra.mxu0 0
    %340 = vmatprep.subr.bf16.mxu0 0
    %341 = vmatpush1.bf16.msra.mxu0 0
    %342 = vmatprep.subr.bf16.mxu0 0
    %343 = vmatpush1.bf16.msra.mxu0 0
    %344 = vmatprep.subr.bf16.mxu0 0
    %345 = vmatpush1.bf16.msra.mxu0 0
    %346 = vmatprep.mubr.bf16.mxu0 0
    %347 = vmatmul.mubr.bf16.gmra.mrb[0].mxu0 %v271
    %v348 = vpop.f32.mrb[0].mxu0
    %v349 = vadd.f32 0.0, %v348
    %v350 = vpop.f32.mrb[0].mxu0
    %v351 = vpop.f32.mrb[0].mxu0
    %v352 = vpop.f32.mrb[0].mxu0
    %353 = vdwg.mxu0
    %v354 = vadd.f32 %v233, %v308
    %v355 = vxor.u32 %v354, 2147483648
    %v356 = vmul.f32 %v355, 1.442695
    %v357 = vpow.pop %v356
    %v358 = vadd.f32 %v357, 1.0
    %v359 = vrcp.pop %v358
    %v360 = vmul.f32 1.0, %v359
    %v361 = vadd.f32 %v234, %v310
    %v362 = vxor.u32 %v361, 2147483648
    %v363 = vmul.f32 %v362, 1.442695
    %v364 = vpow.pop %v363
    %v365 = vadd.f32 %v364, 1.0
    %v366 = vrcp.pop %v365
    %v367 = vmul.f32 1.0, %v366
    %v368 = vadd.f32 %v349, %v211
    %v369 = vmul.f32 %v360, %v368
    %v370 = vadd.f32 %v235, %v369
    %v371 = vtanh.pop %v370
    %v372 = vsub.f32 1.0, %v367
    %v373 = vmul.f32 %v372, %v371
    %v374 = vmul.f32 %v367, %v232
    %v375 = vadd.f32 %v373, %v374
    %v376 = vld [vmem:[#allocation2 + $0x30] sm:$0xff]
    %v377 = vld [vmem:[#allocation2 + $0x38] sm:$0xff]
    %v378 = vld [vmem:[#allocation2 + $0x40] sm:$0xff]
    %v379 = vpack.c.bf16 %v375, %v375
    %v381 = vsel %vm269, %v379, 0
    %383 = vmatprep.subr.bf16.mxu0 %v258
    %384 = vmatpush1.bf16.msra.mxu0 %v257
    %385 = vmatprep.subr.bf16.mxu0 %v261
    %386 = vmatpush1.bf16.msra.mxu0 %v260
    %387 = vmatprep.subr.bf16.mxu0 0
    %388 = vmatpush1.bf16.msra.mxu0 0
    %389 = vmatprep.subr.bf16.mxu0 0
    %390 = vmatpush1.bf16.msra.mxu0 0
    %391 = vmatprep.subr.bf16.mxu0 0
    %392 = vmatpush1.bf16.msra.mxu0 0
    %393 = vmatprep.subr.bf16.mxu0 0
    %394 = vmatpush1.bf16.msra.mxu0 0
    %395 = vmatprep.subr.bf16.mxu0 0
    %396 = vmatpush1.bf16.msra.mxu0 0
    %397 = vmatprep.subr.bf16.mxu0 0
    %398 = vmatpush1.bf16.msra.mxu0 0
    %399 = vmatprep.subr.bf16.mxu0 0
    %400 = vmatpush1.bf16.msra.mxu0 0
    %401 = vmatprep.subr.bf16.mxu0 0
    %402 = vmatpush1.bf16.msra.mxu0 0
    %403 = vmatprep.subr.bf16.mxu0 0
    %404 = vmatpush1.bf16.msra.mxu0 0
    %405 = vmatprep.subr.bf16.mxu0 0
    %406 = vmatpush1.bf16.msra.mxu0 0
    %407 = vmatprep.subr.bf16.mxu0 0
    %408 = vmatpush1.bf16.msra.mxu0 0
    %409 = vmatprep.subr.bf16.mxu0 0
    %410 = vmatpush1.bf16.msra.mxu0 0
    %411 = vmatprep.subr.bf16.mxu0 0
    %412 = vmatpush1.bf16.msra.mxu0 0
    %413 = vmatprep.subr.bf16.mxu0 0
    %414 = vmatpush1.bf16.msra.mxu0 0
    %415 = vmatprep.mubr.bf16.mxu0 0
    %416 = vmatmul.mubr.bf16.gmra.mrb[0].mxu0 %v381
    %v417 = vpop.f32.mrb[0].mxu0
    %v418 = vadd.f32 0.0, %v417
    %v419 = vpop.f32.mrb[0].mxu0
    %v420 = vadd.f32 0.0, %v419
    %v421 = vpop.f32.mrb[0].mxu0
    %v422 = vpop.f32.mrb[0].mxu0
    %423 = vdwg.mxu0
    %424 = vmatprep.subr.bf16.mxu0 0
    %425 = vmatpush1.bf16.msra.mxu0 %v259
    %426 = vmatprep.subr.bf16.mxu0 0
    %427 = vmatpush1.bf16.msra.mxu0 %v262
    %428 = vmatprep.subr.bf16.mxu0 0
    %429 = vmatpush1.bf16.msra.mxu0 0
    %430 = vmatprep.subr.bf16.mxu0 0
    %431 = vmatpush1.bf16.msra.mxu0 0
    %432 = vmatprep.subr.bf16.mxu0 0
    %433 = vmatpush1.bf16.msra.mxu0 0
    %434 = vmatprep.subr.bf16.mxu0 0
    %435 = vmatpush1.bf16.msra.mxu0 0
    %436 = vmatprep.subr.bf16.mxu0 0
    %437 = vmatpush1.bf16.msra.mxu0 0
    %438 = vmatprep.subr.bf16.mxu0 0
    %439 = vmatpush1.bf16.msra.mxu0 0
    %440 = vmatprep.subr.bf16.mxu0 0
    %441 = vmatpush1.bf16.msra.mxu0 0
    %442 = vmatprep.subr.bf16.mxu0 0
    %443 = vmatpush1.bf16.msra.mxu0 0
    %444 = vmatprep.subr.bf16.mxu0 0
    %445 = vmatpush1.bf16.msra.mxu0 0
    %446 = vmatprep.subr.bf16.mxu0 0
    %447 = vmatpush1.bf16.msra.mxu0 0
    %448 = vmatprep.subr.bf16.mxu0 0
    %449 = vmatpush1.bf16.msra.mxu0 0
    %450 = vmatprep.subr.bf16.mxu0 0
    %451 = vmatpush1.bf16.msra.mxu0 0
    %452 = vmatprep.subr.bf16.mxu0 0
    %453 = vmatpush1.bf16.msra.mxu0 0
    %454 = vmatprep.subr.bf16.mxu0 0
    %455 = vmatpush1.bf16.msra.mxu0 0
    %456 = vmatprep.mubr.bf16.mxu0 0
    %457 = vmatmul.mubr.bf16.gmra.mrb[0].mxu0 %v381
    %v458 = vpop.f32.mrb[0].mxu0
    %v459 = vadd.f32 0.0, %v458
    %v460 = vpop.f32.mrb[0].mxu0
    %v461 = vpop.f32.mrb[0].mxu0
    %v462 = vpop.f32.mrb[0].mxu0
    %463 = vdwg.mxu0
    %v464 = vadd.f32 %v376, %v418
    %v465 = vxor.u32 %v464, 2147483648
    %v466 = vmul.f32 %v465, 1.442695
    %v467 = vpow.pop %v466
    %v468 = vadd.f32 %v467, 1.0
    %v469 = vrcp.pop %v468
    %v470 = vmul.f32 1.0, %v469
    %v471 = vadd.f32 %v377, %v420
    %v472 = vxor.u32 %v471, 2147483648
    %v473 = vmul.f32 %v472, 1.442695
    %v474 = vpow.pop %v473
    %v475 = vadd.f32 %v474, 1.0
    %v476 = vrcp.pop %v475
    %v477 = vmul.f32 1.0, %v476
    %v478 = vadd.f32 %v459, %v211
    %v479 = vmul.f32 %v470, %v478
    %v480 = vadd.f32 %v378, %v479
    %v481 = vtanh.pop %v480
    %v482 = vsub.f32 1.0, %v477
    %v483 = vmul.f32 %v482, %v481
    %v484 = vmul.f32 %v477, %v375
    %v485 = vadd.f32 %v483, %v484
    %v486 = vld [vmem:[#allocation2 + $0x48] sm:$0xff]
    %v487 = vld [vmem:[#allocation2 + $0x50] sm:$0xff]
    %v488 = vld [vmem:[#allocation2 + $0x58] sm:$0xff]
    %v489 = vpack.c.bf16 %v485, %v485
    %v491 = vsel %vm269, %v489, 0
    %493 = vmatprep.subr.bf16.mxu0 %v258
    %494 = vmatpush1.bf16.msra.mxu0 %v257
    %495 = vmatprep.subr.bf16.mxu0 %v261
    %496 = vmatpush1.bf16.msra.mxu0 %v260
    %497 = vmatprep.subr.bf16.mxu0 0
    %498 = vmatpush1.bf16.msra.mxu0 0
    %499 = vmatprep.subr.bf16.mxu0 0
    %500 = vmatpush1.bf16.msra.mxu0 0
    %501 = vmatprep.subr.bf16.mxu0 0
    %502 = vmatpush1.bf16.msra.mxu0 0
    %503 = vmatprep.subr.bf16.mxu0 0
    %504 = vmatpush1.bf16.msra.mxu0 0
    %505 = vmatprep.subr.bf16.mxu0 0
    %506 = vmatpush1.bf16.msra.mxu0 0
    %507 = vmatprep.subr.bf16.mxu0 0
    %508 = vmatpush1.bf16.msra.mxu0 0
    %509 = vmatprep.subr.bf16.mxu0 0
    %510 = vmatpush1.bf16.msra.mxu0 0
    %511 = vmatprep.subr.bf16.mxu0 0
    %512 = vmatpush1.bf16.msra.mxu0 0
    %513 = vmatprep.subr.bf16.mxu0 0
    %514 = vmatpush1.bf16.msra.mxu0 0
    %515 = vmatprep.subr.bf16.mxu0 0
    %516 = vmatpush1.bf16.msra.mxu0 0
    %517 = vmatprep.subr.bf16.mxu0 0
    %518 = vmatpush1.bf16.msra.mxu0 0
    %519 = vmatprep.subr.bf16.mxu0 0
    %520 = vmatpush1.bf16.msra.mxu0 0
    %521 = vmatprep.subr.bf16.mxu0 0
    %522 = vmatpush1.bf16.msra.mxu0 0
    %523 = vmatprep.subr.bf16.mxu0 0
    %524 = vmatpush1.bf16.msra.mxu0 0
    %525 = vmatprep.mubr.bf16.mxu0 0
    %526 = vmatmul.mubr.bf16.gmra.mrb[0].mxu0 %v491
    %v527 = vpop.f32.mrb[0].mxu0
    %v528 = vadd.f32 0.0, %v527
    %v529 = vpop.f32.mrb[0].mxu0
    %v530 = vadd.f32 0.0, %v529
    %v531 = vpop.f32.mrb[0].mxu0
    %v532 = vpop.f32.mrb[0].mxu0
    %533 = vdwg.mxu0
    %534 = vmatprep.subr.bf16.mxu0 0
    %535 = vmatpush1.bf16.msra.mxu0 %v259
    %536 = vmatprep.subr.bf16.mxu0 0
    %537 = vmatpush1.bf16.msra.mxu0 %v262
    %538 = vmatprep.subr.bf16.mxu0 0
    %539 = vmatpush1.bf16.msra.mxu0 0
    %540 = vmatprep.subr.bf16.mxu0 0
    %541 = vmatpush1.bf16.msra.mxu0 0
    %542 = vmatprep.subr.bf16.mxu0 0
    %543 = vmatpush1.bf16.msra.mxu0 0
    %544 = vmatprep.subr.bf16.mxu0 0
    %545 = vmatpush1.bf16.msra.mxu0 0
    %546 = vmatprep.subr.bf16.mxu0 0
    %547 = vmatpush1.bf16.msra.mxu0 0
    %548 = vmatprep.subr.bf16.mxu0 0
    %549 = vmatpush1.bf16.msra.mxu0 0
    %550 = vmatprep.subr.bf16.mxu0 0
    %551 = vmatpush1.bf16.msra.mxu0 0
    %552 = vmatprep.subr.bf16.mxu0 0
    %553 = vmatpush1.bf16.msra.mxu0 0
    %554 = vmatprep.subr.bf16.mxu0 0
    %555 = vmatpush1.bf16.msra.mxu0 0
    %556 = vmatprep.subr.bf16.mxu0 0
    %557 = vmatpush1.bf16.msra.mxu0 0
    %558 = vmatprep.subr.bf16.mxu0 0
    %559 = vmatpush1.bf16.msra.mxu0 0
    %560 = vmatprep.subr.bf16.mxu0 0
    %561 = vmatpush1.bf16.msra.mxu0 0
    %562 = vmatprep.subr.bf16.mxu0 0
    %563 = vmatpush1.bf16.msra.mxu0 0
    %564 = vmatprep.subr.bf16.mxu0 0
    %565 = vmatpush1.bf16.msra.mxu0 0
    %566 = vmatprep.mubr.bf16.mxu0 0
    %567 = vmatmul.mubr.bf16.gmra.mrb[0].mxu0 %v491
    %v568 = vpop.f32.mrb[0].mxu0
    %v569 = vadd.f32 0.0, %v568
    %v570 = vpop.f32.mrb[0].mxu0
    %v571 = vpop.f32.mrb[0].mxu0
    %v572 = vpop.f32.mrb[0].mxu0
    %573 = vdwg.mxu0
    %v574 = vadd.f32 %v486, %v528
    %v575 = vxor.u32 %v574, 2147483648
    %v576 = vmul.f32 %v575, 1.442695
    %v577 = vpow.pop %v576
    %v578 = vadd.f32 %v577, 1.0
    %v579 = vrcp.pop %v578
    %v580 = vmul.f32 1.0, %v579
    %v581 = vadd.f32 %v487, %v530
    %v582 = vxor.u32 %v581, 2147483648
    %v583 = vmul.f32 %v582, 1.442695
    %v584 = vpow.pop %v583
    %v585 = vadd.f32 %v584, 1.0
    %v586 = vrcp.pop %v585
    %v587 = vmul.f32 1.0, %v586
    %v588 = vadd.f32 %v569, %v211
    %v589 = vmul.f32 %v580, %v588
    %v590 = vadd.f32 %v488, %v589
    %v591 = vtanh.pop %v590
    %v592 = vsub.f32 1.0, %v587
    %v593 = vmul.f32 %v592, %v591
    %v594 = vmul.f32 %v587, %v485
    %v595 = vadd.f32 %v593, %v594
    %v596 = vld [vmem:[#allocation2 + $0x60] sm:$0xff]
    %v597 = vld [vmem:[#allocation2 + $0x68] sm:$0xff]
    %v598 = vld [vmem:[#allocation2 + $0x70] sm:$0xff]
    %v599 = vpack.c.bf16 %v595, %v595
    %v601 = vsel %vm269, %v599, 0
    %603 = vmatprep.subr.bf16.mxu0 %v258
    %604 = vmatpush1.bf16.msra.mxu0 %v257
    %605 = vmatprep.subr.bf16.mxu0 %v261
    %606 = vmatpush1.bf16.msra.mxu0 %v260
    %607 = vmatprep.subr.bf16.mxu0 0
    %608 = vmatpush1.bf16.msra.mxu0 0
    %609 = vmatprep.subr.bf16.mxu0 0
    %610 = vmatpush1.bf16.msra.mxu0 0
    %611 = vmatprep.subr.bf16.mxu0 0
    %612 = vmatpush1.bf16.msra.mxu0 0
    %613 = vmatprep.subr.bf16.mxu0 0
    %614 = vmatpush1.bf16.msra.mxu0 0
    %615 = vmatprep.subr.bf16.mxu0 0
    %616 = vmatpush1.bf16.msra.mxu0 0
    %617 = vmatprep.subr.bf16.mxu0 0
    %618 = vmatpush1.bf16.msra.mxu0 0
    %619 = vmatprep.subr.bf16.mxu0 0
    %620 = vmatpush1.bf16.msra.mxu0 0
    %621 = vmatprep.subr.bf16.mxu0 0
    %622 = vmatpush1.bf16.msra.mxu0 0
    %623 = vmatprep.subr.bf16.mxu0 0
    %624 = vmatpush1.bf16.msra.mxu0 0
    %625 = vmatprep.subr.bf16.mxu0 0
    %626 = vmatpush1.bf16.msra.mxu0 0
    %627 = vmatprep.subr.bf16.mxu0 0
    %628 = vmatpush1.bf16.msra.mxu0 0
    %629 = vmatprep.subr.bf16.mxu0 0
    %630 = vmatpush1.bf16.msra.mxu0 0
    %631 = vmatprep.subr.bf16.mxu0 0
    %632 = vmatpush1.bf16.msra.mxu0 0
    %633 = vmatprep.subr.bf16.mxu0 0
    %634 = vmatpush1.bf16.msra.mxu0 0
    %635 = vmatprep.mubr.bf16.mxu0 0
    %636 = vmatmul.mubr.bf16.gmra.mrb[0].mxu0 %v601
    %v637 = vpop.f32.mrb[0].mxu0
    %v638 = vadd.f32 0.0, %v637
    %v639 = vpop.f32.mrb[0].mxu0
    %v640 = vadd.f32 0.0, %v639
    %v641 = vpop.f32.mrb[0].mxu0
    %v642 = vpop.f32.mrb[0].mxu0
    %643 = vdwg.mxu0
    %644 = vmatprep.subr.bf16.mxu0 0
    %645 = vmatpush1.bf16.msra.mxu0 %v259
    %646 = vmatprep.subr.bf16.mxu0 0
    %647 = vmatpush1.bf16.msra.mxu0 %v262
    %648 = vmatprep.subr.bf16.mxu0 0
    %649 = vmatpush1.bf16.msra.mxu0 0
    %650 = vmatprep.subr.bf16.mxu0 0
    %651 = vmatpush1.bf16.msra.mxu0 0
    %652 = vmatprep.subr.bf16.mxu0 0
    %653 = vmatpush1.bf16.msra.mxu0 0
    %654 = vmatprep.subr.bf16.mxu0 0
    %655 = vmatpush1.bf16.msra.mxu0 0
    %656 = vmatprep.subr.bf16.mxu0 0
    %657 = vmatpush1.bf16.msra.mxu0 0
    %658 = vmatprep.subr.bf16.mxu0 0
    %659 = vmatpush1.bf16.msra.mxu0 0
    %660 = vmatprep.subr.bf16.mxu0 0
    %661 = vmatpush1.bf16.msra.mxu0 0
    %662 = vmatprep.subr.bf16.mxu0 0
    %663 = vmatpush1.bf16.msra.mxu0 0
    %664 = vmatprep.subr.bf16.mxu0 0
    %665 = vmatpush1.bf16.msra.mxu0 0
    %666 = vmatprep.subr.bf16.mxu0 0
    %667 = vmatpush1.bf16.msra.mxu0 0
    %668 = vmatprep.subr.bf16.mxu0 0
    %669 = vmatpush1.bf16.msra.mxu0 0
    %670 = vmatprep.subr.bf16.mxu0 0
    %671 = vmatpush1.bf16.msra.mxu0 0
    %672 = vmatprep.subr.bf16.mxu0 0
    %673 = vmatpush1.bf16.msra.mxu0 0
    %674 = vmatprep.subr.bf16.mxu0 0
    %675 = vmatpush1.bf16.msra.mxu0 0
    %676 = vmatprep.mubr.bf16.mxu0 0
    %677 = vmatmul.mubr.bf16.gmra.mrb[0].mxu0 %v601
    %v678 = vpop.f32.mrb[0].mxu0
    %v679 = vadd.f32 0.0, %v678
    %v680 = vpop.f32.mrb[0].mxu0
    %v681 = vpop.f32.mrb[0].mxu0
    %v682 = vpop.f32.mrb[0].mxu0
    %683 = vdwg.mxu0
    %v684 = vadd.f32 %v596, %v638
    %v685 = vxor.u32 %v684, 2147483648
    %v686 = vmul.f32 %v685, 1.442695
    %v687 = vpow.pop %v686
    %v688 = vadd.f32 %v687, 1.0
    %v689 = vrcp.pop %v688
    %v690 = vmul.f32 1.0, %v689
    %v691 = vadd.f32 %v597, %v640
    %v692 = vxor.u32 %v691, 2147483648
    %v693 = vmul.f32 %v692, 1.442695
    %v694 = vpow.pop %v693
    %v695 = vadd.f32 %v694, 1.0
    %v696 = vrcp.pop %v695
    %v697 = vmul.f32 1.0, %v696
    %v698 = vadd.f32 %v679, %v211
    %v699 = vmul.f32 %v690, %v698
    %v700 = vadd.f32 %v598, %v699
    %v701 = vtanh.pop %v700
    %v702 = vsub.f32 1.0, %v697
    %v703 = vmul.f32 %v702, %v701
    %v704 = vmul.f32 %v697, %v595
    %v705 = vadd.f32 %v703, %v704
    %v706 = vld [vmem:[#allocation2 + $0x78] sm:$0xff]
    %v707 = vld [vmem:[#allocation2 + $0x80] sm:$0xff]
    %v708 = vld [vmem:[#allocation2 + $0x88] sm:$0xff]
    %v709 = vpack.c.bf16 %v705, %v705
    %v711 = vsel %vm269, %v709, 0
    %713 = vmatprep.subr.bf16.mxu0 %v258
    %714 = vmatpush1.bf16.msra.mxu0 %v257
    %715 = vmatprep.subr.bf16.mxu0 %v261
    %716 = vmatpush1.bf16.msra.mxu0 %v260
    %717 = vmatprep.subr.bf16.mxu0 0
    %718 = vmatpush1.bf16.msra.mxu0 0
    %719 = vmatprep.subr.bf16.mxu0 0
    %720 = vmatpush1.bf16.msra.mxu0 0
    %721 = vmatprep.subr.bf16.mxu0 0
    %722 = vmatpush1.bf16.msra.mxu0 0
    %723 = vmatprep.subr.bf16.mxu0 0
    %724 = vmatpush1.bf16.msra.mxu0 0
    %725 = vmatprep.subr.bf16.mxu0 0
    %726 = vmatpush1.bf16.msra.mxu0 0
    %727 = vmatprep.subr.bf16.mxu0 0
    %728 = vmatpush1.bf16.msra.mxu0 0
    %729 = vmatprep.subr.bf16.mxu0 0
    %730 = vmatpush1.bf16.msra.mxu0 0
    %731 = vmatprep.subr.bf16.mxu0 0
    %732 = vmatpush1.bf16.msra.mxu0 0
    %733 = vmatprep.subr.bf16.mxu0 0
    %734 = vmatpush1.bf16.msra.mxu0 0
    %735 = vmatprep.subr.bf16.mxu0 0
    %736 = vmatpush1.bf16.msra.mxu0 0
    %737 = vmatprep.subr.bf16.mxu0 0
    %738 = vmatpush1.bf16.msra.mxu0 0
    %739 = vmatprep.subr.bf16.mxu0 0
    %740 = vmatpush1.bf16.msra.mxu0 0
    %741 = vmatprep.subr.bf16.mxu0 0
    %742 = vmatpush1.bf16.msra.mxu0 0
    %743 = vmatprep.subr.bf16.mxu0 0
    %744 = vmatpush1.bf16.msra.mxu0 0
    %745 = vmatprep.mubr.bf16.mxu0 0
    %746 = vmatmul.mubr.bf16.gmra.mrb[0].mxu0 %v711
    %v747 = vpop.f32.mrb[0].mxu0
    %v748 = vadd.f32 0.0, %v747
    %v749 = vpop.f32.mrb[0].mxu0
    %v750 = vadd.f32 0.0, %v749
    %v751 = vpop.f32.mrb[0].mxu0
    %v752 = vpop.f32.mrb[0].mxu0
    %753 = vdwg.mxu0
    %754 = vmatprep.subr.bf16.mxu0 0
    %755 = vmatpush1.bf16.msra.mxu0 %v259
    %756 = vmatprep.subr.bf16.mxu0 0
    %757 = vmatpush1.bf16.msra.mxu0 %v262
    %758 = vmatprep.subr.bf16.mxu0 0
    %759 = vmatpush1.bf16.msra.mxu0 0
    %760 = vmatprep.subr.bf16.mxu0 0
    %761 = vmatpush1.bf16.msra.mxu0 0
    %762 = vmatprep.subr.bf16.mxu0 0
    %763 = vmatpush1.bf16.msra.mxu0 0
    %764 = vmatprep.subr.bf16.mxu0 0
    %765 = vmatpush1.bf16.msra.mxu0 0
    %766 = vmatprep.subr.bf16.mxu0 0
    %767 = vmatpush1.bf16.msra.mxu0 0
    %768 = vmatprep.subr.bf16.mxu0 0
    %769 = vmatpush1.bf16.msra.mxu0 0
    %770 = vmatprep.subr.bf16.mxu0 0
    %771 = vmatpush1.bf16.msra.mxu0 0
    %772 = vmatprep.subr.bf16.mxu0 0
    %773 = vmatpush1.bf16.msra.mxu0 0
    %774 = vmatprep.subr.bf16.mxu0 0
    %775 = vmatpush1.bf16.msra.mxu0 0
    %776 = vmatprep.subr.bf16.mxu0 0
    %777 = vmatpush1.bf16.msra.mxu0 0
    %778 = vmatprep.subr.bf16.mxu0 0
    %779 = vmatpush1.bf16.msra.mxu0 0
    %780 = vmatprep.subr.bf16.mxu0 0
    %781 = vmatpush1.bf16.msra.mxu0 0
    %782 = vmatprep.subr.bf16.mxu0 0
    %783 = vmatpush1.bf16.msra.mxu0 0
    %784 = vmatprep.subr.bf16.mxu0 0
    %785 = vmatpush1.bf16.msra.mxu0 0
    %786 = vmatprep.mubr.bf16.mxu0 0
    %787 = vmatmul.mubr.bf16.gmra.mrb[0].mxu0 %v711
    %v788 = vpop.f32.mrb[0].mxu0
    %v789 = vadd.f32 0.0, %v788
    %v790 = vpop.f32.mrb[0].mxu0
    %v791 = vpop.f32.mrb[0].mxu0
    %v792 = vpop.f32.mrb[0].mxu0
    %793 = vdwg.mxu0
    %v794 = vadd.f32 %v706, %v748
    %v795 = vxor.u32 %v794, 2147483648
    %v796 = vmul.f32 %v795, 1.442695
    %v797 = vpow.pop %v796
    %v798 = vadd.f32 %v797, 1.0
    %v799 = vrcp.pop %v798
    %v800 = vmul.f32 1.0, %v799
    %v801 = vadd.f32 %v707, %v750
    %v802 = vxor.u32 %v801, 2147483648
    %v803 = vmul.f32 %v802, 1.442695
    %v804 = vpow.pop %v803
    %v805 = vadd.f32 %v804, 1.0
    %v806 = vrcp.pop %v805
    %v807 = vmul.f32 1.0, %v806
    %v808 = vadd.f32 %v789, %v211
    %v809 = vmul.f32 %v800, %v808
    %v810 = vadd.f32 %v708, %v809
    %v811 = vtanh.pop %v810
    %v812 = vsub.f32 1.0, %v807
    %v813 = vmul.f32 %v812, %v811
    %v814 = vmul.f32 %v807, %v705
    %v815 = vadd.f32 %v813, %v814
    %v816 = vld [vmem:[#allocation2 + $0x90] sm:$0xff]
    %v817 = vld [vmem:[#allocation2 + $0x98] sm:$0xff]
    %v818 = vld [vmem:[#allocation2 + $0xa0] sm:$0xff]
    %v819 = vpack.c.bf16 %v815, %v815
    %v821 = vsel %vm269, %v819, 0
    %823 = vmatprep.subr.bf16.mxu0 %v258
    %824 = vmatpush1.bf16.msra.mxu0 %v257
    %825 = vmatprep.subr.bf16.mxu0 %v261
    %826 = vmatpush1.bf16.msra.mxu0 %v260
    %827 = vmatprep.subr.bf16.mxu0 0
    %828 = vmatpush1.bf16.msra.mxu0 0
    %829 = vmatprep.subr.bf16.mxu0 0
    %830 = vmatpush1.bf16.msra.mxu0 0
    %831 = vmatprep.subr.bf16.mxu0 0
    %832 = vmatpush1.bf16.msra.mxu0 0
    %833 = vmatprep.subr.bf16.mxu0 0
    %834 = vmatpush1.bf16.msra.mxu0 0
    %835 = vmatprep.subr.bf16.mxu0 0
    %836 = vmatpush1.bf16.msra.mxu0 0
    %837 = vmatprep.subr.bf16.mxu0 0
    %838 = vmatpush1.bf16.msra.mxu0 0
    %839 = vmatprep.subr.bf16.mxu0 0
    %840 = vmatpush1.bf16.msra.mxu0 0
    %841 = vmatprep.subr.bf16.mxu0 0
    %842 = vmatpush1.bf16.msra.mxu0 0
    %843 = vmatprep.subr.bf16.mxu0 0
    %844 = vmatpush1.bf16.msra.mxu0 0
    %845 = vmatprep.subr.bf16.mxu0 0
    %846 = vmatpush1.bf16.msra.mxu0 0
    %847 = vmatprep.subr.bf16.mxu0 0
    %848 = vmatpush1.bf16.msra.mxu0 0
    %849 = vmatprep.subr.bf16.mxu0 0
    %850 = vmatpush1.bf16.msra.mxu0 0
    %851 = vmatprep.subr.bf16.mxu0 0
    %852 = vmatpush1.bf16.msra.mxu0 0
    %853 = vmatprep.subr.bf16.mxu0 0
    %854 = vmatpush1.bf16.msra.mxu0 0
    %855 = vmatprep.mubr.bf16.mxu0 0
    %856 = vmatmul.mubr.bf16.gmra.mrb[0].mxu0 %v821
    %v857 = vpop.f32.mrb[0].mxu0
    %v858 = vadd.f32 0.0, %v857
    %v859 = vpop.f32.mrb[0].mxu0
    %v860 = vadd.f32 0.0, %v859
    %v861 = vpop.f32.mrb[0].mxu0
    %v862 = vpop.f32.mrb[0].mxu0
    %863 = vdwg.mxu0
    %864 = vmatprep.subr.bf16.mxu0 0
    %865 = vmatpush1.bf16.msra.mxu0 %v259
    %866 = vmatprep.subr.bf16.mxu0 0
    %867 = vmatpush1.bf16.msra.mxu0 %v262
    %868 = vmatprep.subr.bf16.mxu0 0
    %869 = vmatpush1.bf16.msra.mxu0 0
    %870 = vmatprep.subr.bf16.mxu0 0
    %871 = vmatpush1.bf16.msra.mxu0 0
    %872 = vmatprep.subr.bf16.mxu0 0
    %873 = vmatpush1.bf16.msra.mxu0 0
    %874 = vmatprep.subr.bf16.mxu0 0
    %875 = vmatpush1.bf16.msra.mxu0 0
    %876 = vmatprep.subr.bf16.mxu0 0
    %877 = vmatpush1.bf16.msra.mxu0 0
    %878 = vmatprep.subr.bf16.mxu0 0
    %879 = vmatpush1.bf16.msra.mxu0 0
    %880 = vmatprep.subr.bf16.mxu0 0
    %881 = vmatpush1.bf16.msra.mxu0 0
    %882 = vmatprep.subr.bf16.mxu0 0
    %883 = vmatpush1.bf16.msra.mxu0 0
    %884 = vmatprep.subr.bf16.mxu0 0
    %885 = vmatpush1.bf16.msra.mxu0 0
    %886 = vmatprep.subr.bf16.mxu0 0
    %887 = vmatpush1.bf16.msra.mxu0 0
    %888 = vmatprep.subr.bf16.mxu0 0
    %889 = vmatpush1.bf16.msra.mxu0 0
    %890 = vmatprep.subr.bf16.mxu0 0
    %891 = vmatpush1.bf16.msra.mxu0 0
    %892 = vmatprep.subr.bf16.mxu0 0
    %893 = vmatpush1.bf16.msra.mxu0 0
    %894 = vmatprep.subr.bf16.mxu0 0
    %895 = vmatpush1.bf16.msra.mxu0 0
    %896 = vmatprep.mubr.bf16.mxu0 0
    %897 = vmatmul.mubr.bf16.gmra.mrb[0].mxu0 %v821
    %v898 = vpop.f32.mrb[0].mxu0
    %v899 = vadd.f32 0.0, %v898
    %v900 = vpop.f32.mrb[0].mxu0
    %v901 = vpop.f32.mrb[0].mxu0
    %v902 = vpop.f32.mrb[0].mxu0
    %903 = vdwg.mxu0
    %v904 = vadd.f32 %v816, %v858
    %v905 = vxor.u32 %v904, 2147483648
    %v906 = vmul.f32 %v905, 1.442695
    %v907 = vpow.pop %v906
    %v908 = vadd.f32 %v907, 1.0
    %v909 = vrcp.pop %v908
    %v910 = vmul.f32 1.0, %v909
    %v911 = vadd.f32 %v817, %v860
    %v912 = vxor.u32 %v911, 2147483648
    %v913 = vmul.f32 %v912, 1.442695
    %v914 = vpow.pop %v913
    %v915 = vadd.f32 %v914, 1.0
    %v916 = vrcp.pop %v915
    %v917 = vmul.f32 1.0, %v916
    %v918 = vadd.f32 %v899, %v211
    %v919 = vmul.f32 %v910, %v918
    %v920 = vadd.f32 %v818, %v919
    %v921 = vtanh.pop %v920
    %v922 = vsub.f32 1.0, %v917
    %v923 = vmul.f32 %v922, %v921
    %v924 = vmul.f32 %v917, %v815
    %v925 = vadd.f32 %v923, %v924
    %v926 = vld [vmem:[#allocation2 + $0xa8] sm:$0xff]
    %v927 = vld [vmem:[#allocation2 + $0xb0] sm:$0xff]
    %v928 = vld [vmem:[#allocation2 + $0xb8] sm:$0xff]
    %v929 = vpack.c.bf16 %v925, %v925
    %v931 = vsel %vm269, %v929, 0
    %933 = vmatprep.subr.bf16.mxu0 %v258
    %934 = vmatpush1.bf16.msra.mxu0 %v257
    %935 = vmatprep.subr.bf16.mxu0 %v261
    %936 = vmatpush1.bf16.msra.mxu0 %v260
    %937 = vmatprep.subr.bf16.mxu0 0
    %938 = vmatpush1.bf16.msra.mxu0 0
    %939 = vmatprep.subr.bf16.mxu0 0
    %940 = vmatpush1.bf16.msra.mxu0 0
    %941 = vmatprep.subr.bf16.mxu0 0
    %942 = vmatpush1.bf16.msra.mxu0 0
    %943 = vmatprep.subr.bf16.mxu0 0
    %944 = vmatpush1.bf16.msra.mxu0 0
    %945 = vmatprep.subr.bf16.mxu0 0
    %946 = vmatpush1.bf16.msra.mxu0 0
    %947 = vmatprep.subr.bf16.mxu0 0
    %948 = vmatpush1.bf16.msra.mxu0 0
    %949 = vmatprep.subr.bf16.mxu0 0
    %950 = vmatpush1.bf16.msra.mxu0 0
    %951 = vmatprep.subr.bf16.mxu0 0
    %952 = vmatpush1.bf16.msra.mxu0 0
    %953 = vmatprep.subr.bf16.mxu0 0
    %954 = vmatpush1.bf16.msra.mxu0 0
    %955 = vmatprep.subr.bf16.mxu0 0
    %956 = vmatpush1.bf16.msra.mxu0 0
    %957 = vmatprep.subr.bf16.mxu0 0
    %958 = vmatpush1.bf16.msra.mxu0 0
    %959 = vmatprep.subr.bf16.mxu0 0
    %960 = vmatpush1.bf16.msra.mxu0 0
    %961 = vmatprep.subr.bf16.mxu0 0
    %962 = vmatpush1.bf16.msra.mxu0 0
    %963 = vmatprep.subr.bf16.mxu0 0
    %964 = vmatpush1.bf16.msra.mxu0 0
    %965 = vmatprep.mubr.bf16.mxu0 0
    %966 = vmatmul.mubr.bf16.gmra.mrb[0].mxu0 %v931
    %v967 = vpop.f32.mrb[0].mxu0
    %v968 = vadd.f32 0.0, %v967
    %v969 = vpop.f32.mrb[0].mxu0
    %v970 = vadd.f32 0.0, %v969
    %v971 = vpop.f32.mrb[0].mxu0
    %v972 = vpop.f32.mrb[0].mxu0
    %973 = vdwg.mxu0
    %974 = vmatprep.subr.bf16.mxu0 0
    %975 = vmatpush1.bf16.msra.mxu0 %v259
    %976 = vmatprep.subr.bf16.mxu0 0
    %977 = vmatpush1.bf16.msra.mxu0 %v262
    %978 = vmatprep.subr.bf16.mxu0 0
    %979 = vmatpush1.bf16.msra.mxu0 0
    %980 = vmatprep.subr.bf16.mxu0 0
    %981 = vmatpush1.bf16.msra.mxu0 0
    %982 = vmatprep.subr.bf16.mxu0 0
    %983 = vmatpush1.bf16.msra.mxu0 0
    %984 = vmatprep.subr.bf16.mxu0 0
    %985 = vmatpush1.bf16.msra.mxu0 0
    %986 = vmatprep.subr.bf16.mxu0 0
    %987 = vmatpush1.bf16.msra.mxu0 0
    %988 = vmatprep.subr.bf16.mxu0 0
    %989 = vmatpush1.bf16.msra.mxu0 0
    %990 = vmatprep.subr.bf16.mxu0 0
    %991 = vmatpush1.bf16.msra.mxu0 0
    %992 = vmatprep.subr.bf16.mxu0 0
    %993 = vmatpush1.bf16.msra.mxu0 0
    %994 = vmatprep.subr.bf16.mxu0 0
    %995 = vmatpush1.bf16.msra.mxu0 0
    %996 = vmatprep.subr.bf16.mxu0 0
    %997 = vmatpush1.bf16.msra.mxu0 0
    %998 = vmatprep.subr.bf16.mxu0 0
    %999 = vmatpush1.bf16.msra.mxu0 0
    %1000 = vmatprep.subr.bf16.mxu0 0
    %1001 = vmatpush1.bf16.msra.mxu0 0
    %1002 = vmatprep.subr.bf16.mxu0 0
    %1003 = vmatpush1.bf16.msra.mxu0 0
    %1004 = vmatprep.subr.bf16.mxu0 0
    %1005 = vmatpush1.bf16.msra.mxu0 0
    %1006 = vmatprep.mubr.bf16.mxu0 0
    %1007 = vmatmul.mubr.bf16.gmra.mrb[0].mxu0 %v931
    %v1008 = vpop.f32.mrb[0].mxu0
    %v1009 = vadd.f32 0.0, %v1008
    %v1010 = vpop.f32.mrb[0].mxu0
    %v1011 = vpop.f32.mrb[0].mxu0
    %v1012 = vpop.f32.mrb[0].mxu0
    %1013 = vdwg.mxu0
    %v1014 = vadd.f32 %v926, %v968
    %v1015 = vxor.u32 %v1014, 2147483648
    %v1016 = vmul.f32 %v1015, 1.442695
    %v1017 = vpow.pop %v1016
    %v1018 = vadd.f32 %v1017, 1.0
    %v1019 = vrcp.pop %v1018
    %v1020 = vmul.f32 1.0, %v1019
    %v1021 = vadd.f32 %v927, %v970
    %v1022 = vxor.u32 %v1021, 2147483648
    %v1023 = vmul.f32 %v1022, 1.442695
    %v1024 = vpow.pop %v1023
    %v1025 = vadd.f32 %v1024, 1.0
    %v1026 = vrcp.pop %v1025
    %v1027 = vmul.f32 1.0, %v1026
    %v1028 = vadd.f32 %v1009, %v211
    %v1029 = vmul.f32 %v1020, %v1028
    %v1030 = vadd.f32 %v928, %v1029
    %v1031 = vtanh.pop %v1030
    %v1032 = vsub.f32 1.0, %v1027
    %v1033 = vmul.f32 %v1032, %v1031
    %v1034 = vmul.f32 %v1027, %v925
    %v1035 = vadd.f32 %v1033, %v1034
    %1036 = vst.msk [vmem:[%s4] sm:$0xff] %vm269, %v1035
    // Predicated region
    $region30: #{encoder_forward.1} parent=1 // pred_check
      _
    $region31: #{encoder_forward.1} parent=1 // pred_check_branch
      %1038 = sbr.rel (0) target = $region33
    $region32: #{encoder_forward.1} parent=1 // pred_region
      _
    $region33: #{encoder_forward.1} parent=1 // pred_fallthru
      _
    // Predicated region
    $region34: #{encoder_forward.1} parent=1 // pred_check
      _
    $region35: #{encoder_forward.1} parent=1 // pred_check_branch
      %1040 = sbr.rel (0) target = $region37
    $region36: #{encoder_forward.1} parent=1 // pred_region
      _
    $region37: #{encoder_forward.1} parent=1 // pred_fallthru
      _
    %1041 = vsyncpa [#allocation4], 1
    %1042 = vsyncpa [#allocation8], 1
    %1043 = vsyncpa [#allocation5], 1

</llo_original>
